<compile_context>
chip_gen: v7x
topology: tpu7x:2x2x1
jax: 0.10.0
libtpu: 0.0.40
codegen_flags: <defaults>
</compile_context>

<pallas_src>
import functools

import jax
import jax.numpy as jnp
import numpy as np
from jax.experimental import pallas as pl
from jax.experimental.pallas import tpu as pltpu


def _target_net_kernel(packed_ref, wsmall_ref, wbig_ref, w3b_ref, out_ref,
                       *, D, P, K, SEG):
    f32 = jnp.float32
    two_d, two_k, kk = 2 * D, 2 * K, 2 * K * K

    # --- batch tile (one DMA), already transposed: batch on lanes ---
    x_low = packed_ref[0:two_d, :]                         # [stu_low^T ; exer_low^T]  (2D, tB)
    mask_t = packed_ref[two_d:two_d + K, :]                # kn_emb^T                  (K, tB)
    pr1_t = packed_ref[two_d + K:two_d + K + P + 1, :]     # [prompt^T ; ones]         (P+1, tB)

    # --- constant slabs (static ref-slices; fetched once, stay in VMEM) ---
    wkn = wsmall_ref[:, 0:two_d]                           # blockdiag(kn_low, kn_low) (2K, 2D)
    wfc = wsmall_ref[:, SEG:SEG + two_k]                   # blockdiag(fc1_w[:,P:], fc2_w[:,P:])
    wpb = wsmall_ref[:, 2 * SEG:2 * SEG + P + 1]           # prompt weights + fused biases (2K, P+1)
    wpred = wbig_ref[:, 0:two_k]                           # repeat(blockdiag(w1[:,:K], w2[:,:K]), K) (2K*K, 2K)
    kptf = wbig_ref[:, two_k:two_k + 1]                    # kn-part of prednet, flattened (2K*K, 1)
    w3big = w3b_ref[:, 0:kk]                               # kron([w3, -w3], I_K)      (K, 2K*K)
    b3col = w3b_ref[:, kk:kk + 1]                          # b3 broadcast column       (K, 1)

    def sig(x):
        # sigmoid(x) == 0.5 * (1 + tanh(x/2)): a single EUP op (vs exp + recip).
        return 0.5 * jnp.tanh(0.5 * x) + 0.5

    # 1) old_stu^T / old_exer^T with one block-diagonal MXU push.
    ose = sig(jnp.dot(wkn, x_low, preferred_element_type=f32))                 # (2K, tB)
    # 2) fc1 / fc2 fused; prompt + biases folded into one matmul over [prompt; 1].
    emb = sig(jnp.dot(wfc, ose, preferred_element_type=f32)
              + jnp.dot(wpb, pr1_t, preferred_element_type=f32))               # (2K, tB)
    # 3) fully batched prednet: row r = j*K + k carries
    #    w{1,2}[:, :K] @ emb  (batch part)  +  w{1,2}[:, K:] @ kn_low[k]  (constant).
    z = jnp.dot(wpred, emb, preferred_element_type=f32) + kptf                 # (2K*K, tB)
    zs = sig(z)                                                                # pref / diff interleaved
    # 4) w3 * (pref - diff) as ONE MXU matmul, then one lane-dense sigmoid.
    o = sig(jnp.dot(w3big, zs, preferred_element_type=f32) + b3col)            # (K, tB)
    # 5) masked mean over knowledge concepts, lane-dense (1, tB) output.
    acc = jnp.sum(o * mask_t, axis=0, keepdims=True)
    cnt = jnp.sum(mask_t, axis=0, keepdims=True)
    out_ref[...] = acc / cnt


def target_net_forward(params, stu_id, exer_id, kn_emb, *, max_block_b=2048):
    f32 = jnp.float32
    SEG = 128
    kn_low = params["knowledge_emb"].astype(f32)            # (K, D)
    K, D = kn_low.shape
    P = params["prompt_stu"].shape[1]
    B = stu_id.shape[0]

    # --- JAX glue: embedding gathers (data-dependent, outside the kernel) ---
    stu_low = params["student_emb"][stu_id].astype(f32)     # (B, D)
    prompt = params["prompt_stu"][stu_id].astype(f32)       # (B, P)
    exer_low = params["k_difficulty"][exer_id].astype(f32)  # (B, D)

    # --- batch tiling: lane-dense tiles, always >= 2 "parallel" grid steps ---
    def _round_up(a, m):
        return (a + m - 1) // m * m

    if B <= 2 * max_block_b:
        block_b = max(128, _round_up((B + 1) // 2, 128))
        b_pad = 2 * block_b
    else:
        block_b = max_block_b
        b_pad = _round_up(B, block_b)
    grid = (b_pad // block_b,)

    # Pack ALL narrow batch inputs (plus a ones row for the fused biases),
    # transposed so the batch lies on the lane axis; zero-pad to b_pad.
    ones_row = jnp.ones((1, B), f32)
    packed = jnp.concatenate(
        [stu_low.T, exer_low.T, kn_emb.astype(f32).T, prompt.T, ones_row], axis=0)
    n_rows = 2 * D + K + P + 1
    packed = jnp.pad(packed, ((0, 0), (0, b_pad - B)))       # (n_rows, b_pad)

    # --- batch-invariant constants, hoisted out of the kernel ---
    fc1_w = params["fc1_w"].astype(f32); fc1_b = params["fc1_b"].astype(f32)
    fc2_w = params["fc2_w"].astype(f32); fc2_b = params["fc2_b"].astype(f32)
    w1 = params["w1"].astype(f32); w2 = params["w2"].astype(f32)
    w3 = params["w3"].astype(f32); b3 = params["b3"].astype(f32)

    def _blockdiag(a, b):
        za = jnp.zeros((a.shape[0], b.shape[1]), f32)
        zb = jnp.zeros((b.shape[0], a.shape[1]), f32)
        return jnp.concatenate(
            [jnp.concatenate([a, za], axis=1),
             jnp.concatenate([zb, b], axis=1)], axis=0)

    wkn_bd = _blockdiag(kn_low, kn_low)                      # (2K, 2D)
    wfc_bd = _blockdiag(fc1_w[:, P:], fc2_w[:, P:])          # (2K, 2K)

    # Transform_Exr: 1x1 conv over the stacked s_exer_vectors, then its fc2 term.
    exr = (params["conv_w"].astype(f32) @ params["exr_stack"].astype(f32)
           + params["conv_b"].astype(f32))                   # (1, P)
    exer_const = exr @ fc2_w[:, :P].T + fc2_b                # (1, K)
    wpb = jnp.concatenate(
        [jnp.concatenate([fc1_w[:, :P], fc1_b.T], axis=1),
         jnp.concatenate([jnp.zeros((K, P), f32), exer_const.T], axis=1)],
        axis=0)                                              # (2K, P+1)

    # One small constant slab, segments lane-aligned at 0 / 128 / 256.
    wsmall = jnp.zeros((2 * K, 3 * SEG), f32)
    wsmall = wsmall.at[:, 0:2 * D].set(wkn_bd)
    wsmall = wsmall.at[:, SEG:SEG + 2 * K].set(wfc_bd)
    wsmall = wsmall.at[:, 2 * SEG:2 * SEG + P + 1].set(wpb)

    # Prednet "big" weights: rows indexed r = j*K + k, j in [0,2K), k in [0,K).
    wpred_bd = _blockdiag(w1[:, :K], w2[:, :K])              # (2K, 2K)
    wpred_big = jnp.repeat(wpred_bd, K, axis=0)              # (2K*K, 2K)
    kpt = jnp.concatenate([w1[:, K:] @ kn_low.T, w2[:, K:] @ kn_low.T], axis=0)  # (2K, K)
    kpt_flat = kpt.reshape(2 * K * K, 1)                     # (2K*K, 1)
    wbig = jnp.concatenate([wpred_big, kpt_flat], axis=1)    # (2K*K, 2K+1)

    w3pm = jnp.concatenate([w3, -w3], axis=1)                # (1, 2K)
    w3big = jnp.kron(w3pm, jnp.eye(K, dtype=f32))            # (K, 2K*K)
    b3_col = jnp.broadcast_to(b3.reshape(1, 1), (K, 1)).astype(f32)
    w3b = jnp.concatenate([w3big, b3_col], axis=1)           # (K, 2K*K + 1)

    # --- VMEM budget (generous headroom over the real footprint) ---
    itm = 4 * block_b
    est = (2 * n_rows * itm                 # packed, double-buffered
           + 8 * (2 * K * K) * itm          # prednet intermediates (headroom)
           + 8 * (2 * K) * itm              # small intermediates
           + 8 * itm                        # output rows
           + 8 * (wsmall.size + wbig.size + w3b.size))
    vmem_limit = int(min(96 * 2**20, max(32 * 2**20, est + (4 << 20))))

    in_specs = [
        pl.BlockSpec((n_rows, block_b), lambda i: (0, i)),   # packed batch inputs
        pl.BlockSpec(wsmall.shape, lambda i: (0, 0)),        # small constant slab
        pl.BlockSpec(wbig.shape, lambda i: (0, 0)),          # prednet big weights
        pl.BlockSpec(w3b.shape, lambda i: (0, 0)),           # w3 kron-expansion + b3
    ]
    out_spec = pl.BlockSpec((1, block_b), lambda i: (0, i))  # lane-dense output

    kernel = functools.partial(_target_net_kernel, D=D, P=P, K=K, SEG=SEG)
    out_t = pl.pallas_call(
        kernel,
        out_shape=jax.ShapeDtypeStruct((1, b_pad), jnp.float32),
        grid=grid,
        in_specs=in_specs,
        out_specs=out_spec,
        compiler_params=pltpu.CompilerParams(
            dimension_semantics=("parallel",),
            vmem_limit_bytes=vmem_limit,
        ),
    )(packed, wsmall, wbig, w3b)

    return out_t[:, :B].reshape(B, 1)


def target_net_reference(params, stu_id, exer_id, kn_emb):
    """Pure-JAX reference mirroring the PyTorch forward literally."""
    kn_low = params["knowledge_emb"]
    prompt = params["prompt_stu"][stu_id]
    old_stu = jax.nn.sigmoid(params["student_emb"][stu_id] @ kn_low.T)
    new_stu = jnp.concatenate([prompt, old_stu], axis=1)
    stu_emb = jax.nn.sigmoid(new_stu @ params["fc1_w"].T + params["fc1_b"])

    old_exer = jax.nn.sigmoid(params["k_difficulty"][exer_id] @ kn_low.T)
    exr = params["conv_w"] @ params["exr_stack"] + params["conv_b"]     # (1, P)
    new_exer = jnp.concatenate(
        [jnp.broadcast_to(exr, (old_exer.shape[0], exr.shape[1])), old_exer], axis=1)
    exer_emb = jax.nn.sigmoid(new_exer @ params["fc2_w"].T + params["fc2_b"])

    B, K = stu_emb.shape
    D = kn_low.shape[1]
    stu_vec = jnp.broadcast_to(stu_emb[:, None, :], (B, K, K))
    exer_vec = jnp.broadcast_to(exer_emb[:, None, :], (B, K, K))
    kn_vec = jnp.broadcast_to(kn_low[None, :, :], (B, K, D))
    pref = jax.nn.sigmoid(jnp.concatenate([stu_vec, kn_vec], axis=2) @ params["w1"].T)
    diff = jax.nn.sigmoid(jnp.concatenate([exer_vec, kn_vec], axis=2) @ params["w2"].T)
    o = jax.nn.sigmoid((pref - diff) @ params["w3"].T + params["b3"])   # (B, K, 1)
    sum_out = jnp.sum(o * kn_emb[:, :, None], axis=1)                   # (B, 1)
    count = jnp.sum(kn_emb, axis=1, keepdims=True)
    return sum_out / count


if __name__ == "__main__":
    # Small deterministic config: knowledge_n=16, low_dim=8, pp_dim=8, |s_ranges|=3
    B, K, D, P, S = 8, 16, 8, 8, 3
    stu_n, exer_n = 20, 30

    key = jax.random.PRNGKey(0)
    keys = jax.random.split(key, 16)
    params = {
        "student_emb": jax.random.normal(keys[0], (stu_n, D), jnp.float32) * 0.5,
        "prompt_stu":  jax.random.normal(keys[1], (stu_n, P), jnp.float32) * 0.5,
        "knowledge_emb": jax.random.normal(keys[2], (K, D), jnp.float32) * 0.5,
        "k_difficulty": jax.random.normal(keys[3], (exer_n, D), jnp.float32) * 0.5,
        "exr_stack": jax.random.uniform(keys[4], (S, P), jnp.float32),     # torch.rand
        "conv_w": jax.random.normal(keys[5], (1, S), jnp.float32) * 0.5,   # Conv1d k=1
        "conv_b": jax.random.normal(keys[6], (1, 1), jnp.float32) * 0.1,
        "fc1_w": jax.random.normal(keys[7], (K, P + K), jnp.float32) * 0.2,
        "fc1_b": jax.random.normal(keys[8], (1, K), jnp.float32) * 0.1,
        "fc2_w": jax.random.normal(keys[9], (K, P + K), jnp.float32) * 0.2,
        "fc2_b": jax.random.normal(keys[10], (1, K), jnp.float32) * 0.1,
        "w1": jax.random.normal(keys[11], (K, K + D), jnp.float32) * 0.2,  # prednet_full1 (no bias)
        "w2": jax.random.normal(keys[12], (K, K + D), jnp.float32) * 0.2,  # prednet_full2 (no bias)
        "w3": jax.random.normal(keys[13], (1, K), jnp.float32) * 0.2,      # prednet_full3
        "b3": jax.random.normal(keys[14], (1, 1), jnp.float32) * 0.1,
    }

    idk = jax.random.split(keys[15], 3)
    stu_id = jax.random.randint(idk[0], (B,), 0, stu_n)
    exer_id = jax.random.randint(idk[1], (B,), 0, exer_n)
    kn_emb = (jax.random.uniform(idk[2], (B, K)) < 0.5).astype(jnp.float32)
    kn_emb = kn_emb.at[:, 0].set(1.0)   # guarantee at least one active concept per row

    out = target_net_forward(params, stu_id, exer_id, kn_emb)
    out = jax.block_until_ready(out)

    ref = target_net_reference(params, stu_id, exer_id, kn_emb)
    assert out.shape == (B, 1)
    np.testing.assert_allclose(np.asarray(out), np.asarray(ref), rtol=2e-4, atol=2e-5)
    print("KERNEL_OK")
</pallas_src>

<mosaic_0001>
module attributes {stable_mosaic.version = 11 : i64} {
  func.func @_target_net_kernel(%arg0: i32, %arg1: memref<41x128xf32, #tpu.memory_space<vmem>>, %arg2: memref<32x384xf32, #tpu.memory_space<vmem>>, %arg3: memref<512x33xf32, #tpu.memory_space<vmem>>, %arg4: memref<16x513xf32, #tpu.memory_space<vmem>>, %arg5: memref<1x128xf32, #tpu.memory_space<vmem>>) attributes {dimension_semantics = [#tpu.dimension_semantics<parallel>], iteration_bounds = array<i64: 2>, scalar_prefetch = 0 : i64, scratch_operands = 0 : i64, tpu.core_type = #tpu.core_type<tc>, window_params = [{transform_indices = @transform_0, window_bounds = array<i64: 41, 128>}, {pipeline_mode = #tpu.pipeline_mode<synchronous>, transform_indices = @transform_1, window_bounds = array<i64: 32, 384>}, {pipeline_mode = #tpu.pipeline_mode<synchronous>, transform_indices = @transform_2, window_bounds = array<i64: 512, 33>}, {pipeline_mode = #tpu.pipeline_mode<synchronous>, transform_indices = @transform_3, window_bounds = array<i64: 16, 513>}, {transform_indices = @transform_4, window_bounds = array<i64: 1, 128>}]} {
    %c0 = arith.constant 0 : index
    %c0_0 = arith.constant 0 : index
    %0 = vector.load %arg1[%c0, %c0_0] : memref<41x128xf32, #tpu.memory_space<vmem>>, vector<16x128xf32>
    %c16 = arith.constant 16 : index
    %c0_1 = arith.constant 0 : index
    %1 = vector.load %arg1[%c16, %c0_1] : memref<41x128xf32, #tpu.memory_space<vmem>>, vector<16x128xf32>
    %c32 = arith.constant 32 : index
    %c0_2 = arith.constant 0 : index
    %2 = vector.load %arg1[%c32, %c0_2] : memref<41x128xf32, #tpu.memory_space<vmem>>, vector<9x128xf32>
    %c0_3 = arith.constant 0 : index
    %c0_4 = arith.constant 0 : index
    %3 = vector.load %arg2[%c0_3, %c0_4] : memref<32x384xf32, #tpu.memory_space<vmem>>, vector<32x16xf32>
    %c0_5 = arith.constant 0 : index
    %c128 = arith.constant 128 : index
    %4 = vector.load %arg2[%c0_5, %c128] : memref<32x384xf32, #tpu.memory_space<vmem>>, vector<32x32xf32>
    %c0_6 = arith.constant 0 : index
    %c256 = arith.constant 256 : index
    %5 = vector.load %arg2[%c0_6, %c256] : memref<32x384xf32, #tpu.memory_space<vmem>>, vector<32x9xf32>
    %c0_7 = arith.constant 0 : index
    %c0_8 = arith.constant 0 : index
    %6 = vector.load %arg3[%c0_7, %c0_8] : memref<512x33xf32, #tpu.memory_space<vmem>>, vector<512x32xf32>
    %c0_9 = arith.constant 0 : index
    %c32_10 = arith.constant 32 : index
    %7 = vector.load %arg3[%c0_9, %c32_10] : memref<512x33xf32, #tpu.memory_space<vmem>>, vector<512x1xf32>
    %c0_11 = arith.constant 0 : index
    %c0_12 = arith.constant 0 : index
    %8 = vector.load %arg4[%c0_11, %c0_12] : memref<16x513xf32, #tpu.memory_space<vmem>>, vector<16x512xf32>
    %c0_13 = arith.constant 0 : index
    %c512 = arith.constant 512 : index
    %9 = vector.load %arg4[%c0_13, %c512] : memref<16x513xf32, #tpu.memory_space<vmem>>, vector<16x1xf32>
    %cst = arith.constant dense<0.000000e+00> : vector<32x128xf32>
    %10 = tpu.matmul %3, %0, %cst {dimension_numbers = #tpu.dot_dimension_numbers<[1], [0], [0], [1], [0, 0, 1, 1], [], []>} : vector<32x16xf32>, vector<16x128xf32>, vector<32x128xf32> -> vector<32x128xf32>
    %cst_14 = arith.constant 5.000000e-01 : f32
    %11 = vector.broadcast %cst_14 : f32 to vector<32x128xf32>
    %12 = arith.mulf %11, %10 : vector<32x128xf32>
    %13 = math.tanh %12 : vector<32x128xf32>
    %cst_15 = arith.constant 5.000000e-01 : f32
    %14 = vector.broadcast %cst_15 : f32 to vector<32x128xf32>
    %15 = arith.mulf %14, %13 : vector<32x128xf32>
    %cst_16 = arith.constant 5.000000e-01 : f32
    %16 = vector.broadcast %cst_16 : f32 to vector<32x128xf32>
    %17 = arith.addf %15, %16 : vector<32x128xf32>
    %cst_17 = arith.constant dense<0.000000e+00> : vector<32x128xf32>
    %18 = tpu.matmul %4, %17, %cst_17 {dimension_numbers = #tpu.dot_dimension_numbers<[1], [0], [0], [1], [0, 0, 1, 1], [], []>} : vector<32x32xf32>, vector<32x128xf32>, vector<32x128xf32> -> vector<32x128xf32>
    %cst_18 = arith.constant dense<0.000000e+00> : vector<32x128xf32>
    %19 = tpu.matmul %5, %2, %cst_18 {dimension_numbers = #tpu.dot_dimension_numbers<[1], [0], [0], [1], [0, 0, 1, 1], [], []>} : vector<32x9xf32>, vector<9x128xf32>, vector<32x128xf32> -> vector<32x128xf32>
    %20 = arith.addf %18, %19 : vector<32x128xf32>
    %cst_19 = arith.constant 5.000000e-01 : f32
    %21 = vector.broadcast %cst_19 : f32 to vector<32x128xf32>
    %22 = arith.mulf %21, %20 : vector<32x128xf32>
    %23 = math.tanh %22 : vector<32x128xf32>
    %cst_20 = arith.constant 5.000000e-01 : f32
    %24 = vector.broadcast %cst_20 : f32 to vector<32x128xf32>
    %25 = arith.mulf %24, %23 : vector<32x128xf32>
    %cst_21 = arith.constant 5.000000e-01 : f32
    %26 = vector.broadcast %cst_21 : f32 to vector<32x128xf32>
    %27 = arith.addf %25, %26 : vector<32x128xf32>
    %cst_22 = arith.constant dense<0.000000e+00> : vector<512x128xf32>
    %28 = tpu.matmul %6, %27, %cst_22 {dimension_numbers = #tpu.dot_dimension_numbers<[1], [0], [0], [1], [0, 0, 1, 1], [], []>} : vector<512x32xf32>, vector<32x128xf32>, vector<512x128xf32> -> vector<512x128xf32>
    %29 = vector.broadcast %7 : vector<512x1xf32> to vector<512x128xf32>
    %30 = arith.addf %28, %29 : vector<512x128xf32>
    %cst_23 = arith.constant 5.000000e-01 : f32
    %31 = vector.broadcast %cst_23 : f32 to vector<512x128xf32>
    %32 = arith.mulf %31, %30 : vector<512x128xf32>
    %33 = math.tanh %32 : vector<512x128xf32>
    %cst_24 = arith.constant 5.000000e-01 : f32
    %34 = vector.broadcast %cst_24 : f32 to vector<512x128xf32>
    %35 = arith.mulf %34, %33 : vector<512x128xf32>
    %cst_25 = arith.constant 5.000000e-01 : f32
    %36 = vector.broadcast %cst_25 : f32 to vector<512x128xf32>
    %37 = arith.addf %35, %36 : vector<512x128xf32>
    %cst_26 = arith.constant dense<0.000000e+00> : vector<16x128xf32>
    %38 = tpu.matmul %8, %37, %cst_26 {dimension_numbers = #tpu.dot_dimension_numbers<[1], [0], [0], [1], [0, 0, 1, 1], [], []>} : vector<16x512xf32>, vector<512x128xf32>, vector<16x128xf32> -> vector<16x128xf32>
    %39 = vector.broadcast %9 : vector<16x1xf32> to vector<16x128xf32>
    %40 = arith.addf %38, %39 : vector<16x128xf32>
    %cst_27 = arith.constant 5.000000e-01 : f32
    %41 = vector.broadcast %cst_27 : f32 to vector<16x128xf32>
    %42 = arith.mulf %41, %40 : vector<16x128xf32>
    %43 = math.tanh %42 : vector<16x128xf32>
    %cst_28 = arith.constant 5.000000e-01 : f32
    %44 = vector.broadcast %cst_28 : f32 to vector<16x128xf32>
    %45 = arith.mulf %44, %43 : vector<16x128xf32>
    %cst_29 = arith.constant 5.000000e-01 : f32
    %46 = vector.broadcast %cst_29 : f32 to vector<16x128xf32>
    %47 = arith.addf %45, %46 : vector<16x128xf32>
    %48 = arith.mulf %47, %1 : vector<16x128xf32>
    %cst_30 = arith.constant dense<0.000000e+00> : vector<128xf32>
    %49 = vector.multi_reduction <add>, %48, %cst_30 [0] : vector<16x128xf32> to vector<128xf32>
    %50 = vector.shape_cast %49 : vector<128xf32> to vector<1x128xf32>
    %cst_31 = arith.constant dense<0.000000e+00> : vector<128xf32>
    %51 = vector.multi_reduction <add>, %1, %cst_31 [0] : vector<16x128xf32> to vector<128xf32>
    %52 = vector.shape_cast %51 : vector<128xf32> to vector<1x128xf32>
    %53 = arith.divf %50, %52 : vector<1x128xf32>
    %c0_32 = arith.constant 0 : index
    %c0_33 = arith.constant 0 : index
    %54 = vector.load %arg5[%c0_32, %c0_33] : memref<1x128xf32, #tpu.memory_space<vmem>>, vector<1x128xf32>
    tpu.vector_store %arg5[%c0_32, %c0_33], %53 {strides = array<i32>} : memref<1x128xf32, #tpu.memory_space<vmem>>, vector<1x128xf32>,
    return
  }
  func.func @transform_0(%arg0: i32) -> (i32, i32) {
    %c0_i32 = arith.constant 0 : i32
    %c0_i32_0 = arith.constant 0 : i32
    return %c0_i32, %arg0 : i32, i32
  }
  func.func @transform_1(%arg0: i32) -> (i32, i32) {
    %c0_i32 = arith.constant 0 : i32
    %c0_i32_0 = arith.constant 0 : i32
    %c0_i32_1 = arith.constant 0 : i32
    return %c0_i32, %c0_i32_0 : i32, i32
  }
  func.func @transform_2(%arg0: i32) -> (i32, i32) {
    %c0_i32 = arith.constant 0 : i32
    %c0_i32_0 = arith.constant 0 : i32
    %c0_i32_1 = arith.constant 0 : i32
    return %c0_i32, %c0_i32_0 : i32, i32
  }
  func.func @transform_3(%arg0: i32) -> (i32, i32) {
    %c0_i32 = arith.constant 0 : i32
    %c0_i32_0 = arith.constant 0 : i32
    %c0_i32_1 = arith.constant 0 : i32
    return %c0_i32, %c0_i32_0 : i32, i32
  }
  func.func @transform_4(%arg0: i32) -> (i32, i32) {
    %c0_i32 = arith.constant 0 : i32
    %c0_i32_0 = arith.constant 0 : i32
    return %c0_i32, %arg0 : i32, i32
  }
}

</mosaic_0001>

<llo_original>
// kernel: tpu_custom_call.1
$region0: #{tpu_custom_call.1}
  #allocation0 [shape = 'u32[]', space=smem, size = 0x4, offset = 0x4, fixed_abs, tag = 'smem constant byte address 0x4 - core index']
  #allocation1 [shape = 'u32[144,128]{1,0:T(1,128)}', space=vmem, size = 0x12000, scoped, tag = 'internal scratch']
  %s0 = inlined_call_operand.vmem [shape: f32[41,256], index: 0, kind: input, shape index: {}]
  %s1 = inlined_call_operand.vmem [shape: f32[32,384], index: 1, kind: input, shape index: {}]
  %s2 = inlined_call_operand.vmem [shape: f32[512,33], index: 2, kind: input, shape index: {}]
  %s3 = inlined_call_operand.vmem [shape: f32[16,513], index: 3, kind: input, shape index: {}]
  %s4 = inlined_call_operand.hbm [shape: f32[1,256], index: 4, kind: output, shape index: {}]
  %s5 = sld [smem:[#allocation0]]
  $region87: #{tpu_custom_call.1} parent=0
    _
  %s7 = ssub.s32 1, %s5
  %s8 = scalar_select 0, %s7, %s5
  $region1: #{tpu_custom_call.1} parent=0
    #allocation2 [shape = 'u8[49152]{0}', space=vmem, size = 0xc000, scoped, tag = 'input window, operand 0']
    #allocation3 [shape = 'u8[1024]{0}', space=vmem, size = 0x400, scoped, tag = 'output window, operand 0']
    #allocation4 [shape = 's32[2]{0}', space=sflag, size = 0x8, scoped, tag = 'scoped memory for tpu_custom_call.1']
    %9 = vsyncpa [#allocation4], 0
    %s10 = scalar_lea.sflag [#allocation4], 1
    %11 = vsyncpa %s10, 0
    loop: start=0, step=1, limit=4
    $region2: #{tpu_custom_call.1} parent=1 // loop_pre_header
      _
    $region3: #{tpu_custom_call.1} parent=1 // loop_header
      %s13 = sphi 0, %s17
      %p14 = scmp.ge.s32.totalorder %s13, 4
      %s23 = sphi 0, %s25
      %s26 = sphi 0, %s23
      %s27 = sphi 0, %s26
      %s43 = sphi 0, %s27
      %s47 = sphi 0, %s47
      %s49 = sphi 0, %s47
      %s50 = sphi 0, %s49
      %s64 = sphi 0, %s50
      %s68 = sphi 0, %s68
      %s70 = sphi 0, %s68
      %s71 = sphi 0, %s70
      %s85 = sphi 0, %s71
      %s89 = sphi 0, %s89
      %s91 = sphi 0, %s89
      %s92 = sphi 0, %s91
      %s106 = sphi 0, %s92
      %s112 = sphi 0, %s114
      %s115 = sphi 0, %s112
      %s116 = sphi 0, %s115
      %s132 = sphi 0, %s116
    $region4: #{tpu_custom_call.1} parent=1 // loop_header_branch
      %16 = sbr.rel (%p14) target = $region8
    $region5: #{tpu_custom_call.1} parent=1 // loop_body
      %s18 = ssub.s32 %s13, 1
      %s19 = ssub.s32 %s13, 2
      %s20 = sadd.s32 %s13, 1
      %s21 = ssub.s32 %s13, %s20
      %p22 = scmp.eq.s32.totalorder %s21, 0
      %s24 = sadd.s32 %s23, 1
      %s25 = scalar_select %p22, %s23, %s24
      %p28 = pneg %p22
      %p29 = scmp.eq.s32.totalorder %s13, 1
      %p30 = por %p28, %p29
      %p31 = scmp.ne.s32.totalorder %s23, %s26
      %p32 = scmp.eq.s32.totalorder %s13, 0
      %p33 = por %p31, %p32
      %p34 = scmp.ne.s32.totalorder %s23, %s26
      %p35 = scmp.eq.s32.totalorder %s18, 1
      %p36 = por %p34, %p35
      %p37 = scmp.ne.s32.totalorder %s26, %s27
      %p38 = scmp.eq.s32.totalorder %s18, 0
      %p39 = por %p37, %p38
      %p40 = scmp.ne.s32.totalorder %s26, %s27
      %p41 = scmp.eq.s32.totalorder %s19, 1
      %p42 = por %p40, %p41
      %p44 = scmp.ne.s32.totalorder %s27, %s43
      %p45 = scmp.eq.s32.totalorder %s19, 0
      %p46 = por %p44, %p45
      %s48 = sadd.s32 %s47, 1
      %p51 = scmp.eq.s32.totalorder %s13, 1
      %p52 = scmp.ne.s32.totalorder %s47, %s49
      %p53 = scmp.eq.s32.totalorder %s13, 0
      %p54 = por %p52, %p53
      %p55 = scmp.ne.s32.totalorder %s47, %s49
      %p56 = scmp.eq.s32.totalorder %s18, 1
      %p57 = por %p55, %p56
      %p58 = scmp.ne.s32.totalorder %s49, %s50
      %p59 = scmp.eq.s32.totalorder %s18, 0
      %p60 = por %p58, %p59
      %p61 = scmp.ne.s32.totalorder %s49, %s50
      %p62 = scmp.eq.s32.totalorder %s19, 1
      %p63 = por %p61, %p62
      %p65 = scmp.ne.s32.totalorder %s50, %s64
      %p66 = scmp.eq.s32.totalorder %s19, 0
      %p67 = por %p65, %p66
      %s69 = sadd.s32 %s68, 1
      %p72 = scmp.eq.s32.totalorder %s13, 1
      %p73 = scmp.ne.s32.totalorder %s68, %s70
      %p74 = scmp.eq.s32.totalorder %s13, 0
      %p75 = por %p73, %p74
      %p76 = scmp.ne.s32.totalorder %s68, %s70
      %p77 = scmp.eq.s32.totalorder %s18, 1
      %p78 = por %p76, %p77
      %p79 = scmp.ne.s32.totalorder %s70, %s71
      %p80 = scmp.eq.s32.totalorder %s18, 0
      %p81 = por %p79, %p80
      %p82 = scmp.ne.s32.totalorder %s70, %s71
      %p83 = scmp.eq.s32.totalorder %s19, 1
      %p84 = por %p82, %p83
      %p86 = scmp.ne.s32.totalorder %s71, %s85
      %p87 = scmp.eq.s32.totalorder %s19, 0
      %p88 = por %p86, %p87
      %s90 = sadd.s32 %s89, 1
      %p93 = scmp.eq.s32.totalorder %s13, 1
      %p94 = scmp.ne.s32.totalorder %s89, %s91
      %p95 = scmp.eq.s32.totalorder %s13, 0
      %p96 = por %p94, %p95
      %p97 = scmp.ne.s32.totalorder %s89, %s91
      %p98 = scmp.eq.s32.totalorder %s18, 1
      %p99 = por %p97, %p98
      %p100 = scmp.ne.s32.totalorder %s91, %s92
      %p101 = scmp.eq.s32.totalorder %s18, 0
      %p102 = por %p100, %p101
      %p103 = scmp.ne.s32.totalorder %s91, %s92
      %p104 = scmp.eq.s32.totalorder %s19, 1
      %p105 = por %p103, %p104
      %p107 = scmp.ne.s32.totalorder %s92, %s106
      %p108 = scmp.eq.s32.totalorder %s19, 0
      %p109 = por %p107, %p108
      %s110 = ssub.s32 %s13, %s20
      %p111 = scmp.eq.s32.totalorder %s110, 0
      %s113 = sadd.s32 %s112, 1
      %s114 = scalar_select %p111, %s112, %s113
      %p117 = pneg %p111
      %p118 = scmp.eq.s32.totalorder %s13, 1
      %p119 = por %p117, %p118
      %p120 = scmp.ne.s32.totalorder %s112, %s115
      %p121 = scmp.eq.s32.totalorder %s13, 0
      %p122 = por %p120, %p121
      %p123 = scmp.ne.s32.totalorder %s112, %s115
      %p124 = scmp.eq.s32.totalorder %s18, 1
      %p125 = por %p123, %p124
      %p126 = scmp.ne.s32.totalorder %s115, %s116
      %p127 = scmp.eq.s32.totalorder %s18, 0
      %p128 = por %p126, %p127
      %p129 = scmp.ne.s32.totalorder %s115, %s116
      %p130 = scmp.eq.s32.totalorder %s19, 1
      %p131 = por %p129, %p130
      %p133 = scmp.ne.s32.totalorder %s116, %s132
      %p134 = scmp.eq.s32.totalorder %s19, 0
      %p135 = por %p133, %p134
      %p136 = scmp.le.s32.totalorder 1, %s13
      %p137 = scmp.lt.s32.totalorder %s13, 3
      %p138 = pnand %p136, %p137
      %p139 = pneg %p138
      // Predicated region
      $region9: #{tpu_custom_call.1} parent=5 // pred_check
        _
      $region10: #{tpu_custom_call.1} parent=5 // pred_check_branch
        %141 = sbr.rel (%p138) target = $region12
      $region11: #{tpu_custom_call.1} parent=5 // pred_region
        %s142 = ssub.s32 %s13, 1
        // Predicated region
        $region13: #{tpu_custom_call.1} parent=11 // pred_check
          %p143 = pneg %p60
        $region14: #{tpu_custom_call.1} parent=11 // pred_check_branch
          %145 = sbr.rel (%p143) target = $region16
        $region15: #{tpu_custom_call.1} parent=11 // pred_region
          _
        $region16: #{tpu_custom_call.1} parent=11 // pred_fallthru
          _
        // Predicated region
        $region17: #{tpu_custom_call.1} parent=11 // pred_check
          %p146 = pneg %p81
        $region18: #{tpu_custom_call.1} parent=11 // pred_check_branch
          %148 = sbr.rel (%p146) target = $region20
        $region19: #{tpu_custom_call.1} parent=11 // pred_region
          _
        $region20: #{tpu_custom_call.1} parent=11 // pred_fallthru
          _
        // Predicated region
        $region21: #{tpu_custom_call.1} parent=11 // pred_check
          %p149 = pneg %p102
        $region22: #{tpu_custom_call.1} parent=11 // pred_check_branch
          %151 = sbr.rel (%p149) target = $region24
        $region23: #{tpu_custom_call.1} parent=11 // pred_region
          _
        $region24: #{tpu_custom_call.1} parent=11 // pred_fallthru
          _
      $region12: #{tpu_custom_call.1} parent=5 // pred_fallthru
        _
      %p152 = scmp.lt.s32.totalorder %s13, 2
      // Predicated region
      $region25: #{tpu_custom_call.1} parent=5 // pred_check
        %p153 = pneg %p152
      $region26: #{tpu_custom_call.1} parent=5 // pred_check_branch
        %155 = sbr.rel (%p153) target = $region28
      $region27: #{tpu_custom_call.1} parent=5 // pred_region
        // Predicated region
        $region29: #{tpu_custom_call.1} parent=27 // pred_check
          %p156 = pneg %p33
        $region30: #{tpu_custom_call.1} parent=27 // pred_check_branch
          %158 = sbr.rel (%p156) target = $region32
        $region31: #{tpu_custom_call.1} parent=27 // pred_region
          %s159 = sand.u32 %s23, 1
          %s160 = sand.u32 %s23, 1
          %s161 = smul.addr %s160, 48
          %s162 = scalar_lea.vmem [#allocation2], %s161
          %s163 = smul.addr %s13, 8
          %s164 = scalar_lea.vmem %s0, %s163
          // Predicated region
          $region33: #{tpu_custom_call.1} parent=31 // pred_check
            _
          $region34: #{tpu_custom_call.1} parent=31 // pred_check_branch
            %166 = sbr.rel (0) target = $region36
          $region35: #{tpu_custom_call.1} parent=31 // pred_region
            // Predicated region
            $region37: #{tpu_custom_call.1} parent=35 // pred_check
              _
            $region38: #{tpu_custom_call.1} parent=35 // pred_check_branch
              %168 = sbr.rel (0) target = $region40
            $region39: #{tpu_custom_call.1} parent=35 // pred_region
              // Predicated region
              $region52: #{tpu_custom_call.1} parent=39 // pred_check
                _
              $region53: #{tpu_custom_call.1} parent=39 // pred_check_branch
                %193 = sbr.rel (0) target = $region55
              $region54: #{tpu_custom_call.1} parent=39 // pred_region
                loop: start=0, step=1, limit=1
                $region56: #{tpu_custom_call.1} parent=54 // loop_pre_header
                  _
                $region57: #{tpu_custom_call.1} parent=54 // loop_header
                  %s195 = sphi 0, %s199
                  %p196 = scmp.ge.s32.totalorder %s195, 1
                  %s200 = sphi %s164, %s164
                  %s201 = sphi %s162, %s162
                $region58: #{tpu_custom_call.1} parent=54 // loop_header_branch
                  %198 = sbr.rel (%p196) target = $region62
                $region59: #{tpu_custom_call.1} parent=54 // loop_body
                  %v202 = vld [vmem:[%s200] sm:$0xff]
                  %203 = vst [vmem:[%s201] sm:$0xff] %v202
                  %v204 = vld [vmem:[%s200 + $0x10] sm:$0xff]
                  %205 = vst [vmem:[%s201 + $0x8] sm:$0xff] %v204
                  %v206 = vld [vmem:[%s200 + $0x20] sm:$0xff]
                  %207 = vst [vmem:[%s201 + $0x10] sm:$0xff] %v206
                  %v208 = vld [vmem:[%s200 + $0x30] sm:$0xff]
                  %209 = vst [vmem:[%s201 + $0x18] sm:$0xff] %v208
                  %v210 = vld [vmem:[%s200 + $0x40] sm:$0xff]
                  %211 = vst [vmem:[%s201 + $0x20] sm:$0xff] %v210
                  %v212 = vld [vmem:[%s200 + $0x50] sm:$0xff]
                  %213 = vst [vmem:[%s201 + $0x28] sm:$0xff] %v212
                $region60: #{tpu_custom_call.1} parent=54 // loop_footer
                  %s199 = sadd.s32 1, %s195
                $region61: #{tpu_custom_call.1} parent=54 // loop_footer_branch
                  %194 = sbr.rel target = $region57
                $region62: #{tpu_custom_call.1} parent=54 // loop_exit
                  _
              $region55: #{tpu_custom_call.1} parent=39 // pred_fallthru
                _
              // Predicated region
              $region63: #{tpu_custom_call.1} parent=39 // pred_check
                _
              $region64: #{tpu_custom_call.1} parent=39 // pred_check_branch
                %215 = sbr.rel target = $region66
              $region65: #{tpu_custom_call.1} parent=39 // pred_region
                _
              $region66: #{tpu_custom_call.1} parent=39 // pred_fallthru
                _
            $region40: #{tpu_custom_call.1} parent=35 // pred_fallthru
              _
            // Predicated region
            $region41: #{tpu_custom_call.1} parent=35 // pred_check
              _
            $region42: #{tpu_custom_call.1} parent=35 // pred_check_branch
              %170 = sbr.rel target = $region44
            $region43: #{tpu_custom_call.1} parent=35 // pred_region
              loop: start=0, step=1, limit=1
              $region45: #{tpu_custom_call.1} parent=43 // loop_pre_header
                _
              $region46: #{tpu_custom_call.1} parent=43 // loop_header
                %s173 = sphi 0, %s177
                %p174 = scmp.ge.s32.totalorder %s173, 1
                %s178 = sphi %s164, %s164
                %s179 = sphi %s162, %s162
              $region47: #{tpu_custom_call.1} parent=43 // loop_header_branch
                %176 = sbr.rel (%p174) target = $region51
              $region48: #{tpu_custom_call.1} parent=43 // loop_body
                %v180 = vld [vmem:[%s178] sm:$0xff]
                %181 = vst [vmem:[%s179] sm:$0xff] %v180
                %v182 = vld [vmem:[%s178 + $0x10] sm:$0xff]
                %183 = vst [vmem:[%s179 + $0x8] sm:$0xff] %v182
                %v184 = vld [vmem:[%s178 + $0x20] sm:$0xff]
                %185 = vst [vmem:[%s179 + $0x10] sm:$0xff] %v184
                %v186 = vld [vmem:[%s178 + $0x30] sm:$0xff]
                %187 = vst [vmem:[%s179 + $0x18] sm:$0xff] %v186
                %v188 = vld [vmem:[%s178 + $0x40] sm:$0xff]
                %189 = vst [vmem:[%s179 + $0x20] sm:$0xff] %v188
                %v190 = vld [vmem:[%s178 + $0x50] sm:$0xff]
                %191 = vst [vmem:[%s179 + $0x28] sm:$0xff] %v190
              $region49: #{tpu_custom_call.1} parent=43 // loop_footer
                %s177 = sadd.s32 1, %s173
              $region50: #{tpu_custom_call.1} parent=43 // loop_footer_branch
                %172 = sbr.rel target = $region46
              $region51: #{tpu_custom_call.1} parent=43 // loop_exit
                _
            $region44: #{tpu_custom_call.1} parent=35 // pred_fallthru
              _
          $region36: #{tpu_custom_call.1} parent=31 // pred_fallthru
            _
          %216 = vnop
        $region32: #{tpu_custom_call.1} parent=27 // pred_fallthru
          _
      $region28: #{tpu_custom_call.1} parent=5 // pred_fallthru
        _
      %p217 = scmp.le.s32.totalorder 1, %s13
      %p218 = scmp.lt.s32.totalorder %s13, 3
      %p219 = pnand %p217, %p218
      %p220 = pneg %p219
      // Predicated region
      $region67: #{tpu_custom_call.1} parent=5 // pred_check
        _
      $region68: #{tpu_custom_call.1} parent=5 // pred_check_branch
        %222 = sbr.rel (%p219) target = $region70
      $region69: #{tpu_custom_call.1} parent=5 // pred_region
        %s223 = ssub.s32 %s13, 1
        %s224 = sand.u32 %s26, 1
        %s225 = sand.u32 %s26, 1
        %s226 = smul.addr %s225, 48
        %s227 = scalar_lea.vmem [#allocation2], %s226
        // Predicated region
        $region71: #{tpu_custom_call.1} parent=69 // pred_check
          %p228 = pneg %p39
        $region72: #{tpu_custom_call.1} parent=69 // pred_check_branch
          %230 = sbr.rel (%p228) target = $region74
        $region73: #{tpu_custom_call.1} parent=69 // pred_region
          _
        $region74: #{tpu_custom_call.1} parent=69 // pred_fallthru
          _
        %s231 = sand.u32 %s26, 1
        %s232 = sand.u32 %s26, 1
        %s233 = smul.addr %s232, 48
        %s234 = scalar_lea.vmem [#allocation2], %s233
        %p235 = pneg %p39
        %p236 = pneg %p36
        %p237 = pneg %p60
        %p238 = pneg %p57
        %p239 = pneg %p81
        %p240 = pneg %p78
        %p241 = pneg %p102
        %p242 = pneg %p99
        %p243 = pneg %p128
        %p244 = pneg %p125
        %s245 = sand.u32 %s115, 1
        %s246 = scalar_lea.sflag [#allocation4], %s245
        %s247 = sand.u32 %s115, 1
        %s248 = scalar_lea.vmem [#allocation3], %s247
        %v249 = vld [vmem:[%s227] sm:$0xff]
        %v250 = vld [vmem:[%s227 + $0x8] sm:$0xff]
        %v251 = vld [vmem:[%s227 + $0x10] sm:$0xff]
        %v252 = vld [vmem:[%s227 + $0x18] sm:$0xff]
        %v253 = vld [vmem:[%s227 + $0x20] sm:$0xff]
        %v254 = vld [vmem:[%s227 + $0x28] sm:$0x1]
        %v255 = vld [vmem:[%s1] sm:$0xff]
        %v256 = vld [vmem:[%s1 + $0x18] sm:$0xff]
        %v257 = vld [vmem:[%s1 + $0x30] sm:$0xff]
        %v258 = vld [vmem:[%s1 + $0x48] sm:$0xff]
        %v259 = vld [vmem:[%s1 + $0x8] sm:$0xff]
        %v260 = vld [vmem:[%s1 + $0x20] sm:$0xff]
        %v261 = vld [vmem:[%s1 + $0x38] sm:$0xff]
        %v262 = vld [vmem:[%s1 + $0x50] sm:$0xff]
        %v263 = vld [vmem:[%s1 + $0x10] sm:$0xff]
        %v264 = vld [vmem:[%s1 + $0x28] sm:$0xff]
        %v265 = vld [vmem:[%s1 + $0x40] sm:$0xff]
        %v266 = vld [vmem:[%s1 + $0x58] sm:$0xff]
        %v267 = vld [vmem:[%s2] sm:$0xff]
        %v268 = vld [vmem:[%s2 + $0x8] sm:$0xff]
        %v269 = vld [vmem:[%s2 + $0x10] sm:$0xff]
        %v270 = vld [vmem:[%s2 + $0x18] sm:$0xff]
        %v271 = vld [vmem:[%s2 + $0x20] sm:$0xff]
        %v272 = vld [vmem:[%s2 + $0x28] sm:$0xff]
        %v273 = vld [vmem:[%s2 + $0x30] sm:$0xff]
        %v274 = vld [vmem:[%s2 + $0x38] sm:$0xff]
        %v275 = vld [vmem:[%s2 + $0x40] sm:$0xff]
        %v276 = vld [vmem:[%s2 + $0x48] sm:$0xff]
        %v277 = vld [vmem:[%s2 + $0x50] sm:$0xff]
        %v278 = vld [vmem:[%s2 + $0x58] sm:$0xff]
        %v279 = vld [vmem:[%s2 + $0x60] sm:$0xff]
        %v280 = vld [vmem:[%s2 + $0x68] sm:$0xff]
        %v281 = vld [vmem:[%s2 + $0x70] sm:$0xff]
        %v282 = vld [vmem:[%s2 + $0x78] sm:$0xff]
        %v283 = vld [vmem:[%s2 + $0x80] sm:$0xff]
        %v284 = vld [vmem:[%s2 + $0x88] sm:$0xff]
        %v285 = vld [vmem:[%s2 + $0x90] sm:$0xff]
        %v286 = vld [vmem:[%s2 + $0x98] sm:$0xff]
        %v287 = vld [vmem:[%s2 + $0xa0] sm:$0xff]
        %v288 = vld [vmem:[%s2 + $0xa8] sm:$0xff]
        %v289 = vld [vmem:[%s2 + $0xb0] sm:$0xff]
        %v290 = vld [vmem:[%s2 + $0xb8] sm:$0xff]
        %v291 = vld [vmem:[%s2 + $0xc0] sm:$0xff]
        %v292 = vld [vmem:[%s2 + $0xc8] sm:$0xff]
        %v293 = vld [vmem:[%s2 + $0xd0] sm:$0xff]
        %v294 = vld [vmem:[%s2 + $0xd8] sm:$0xff]
        %v295 = vld [vmem:[%s2 + $0xe0] sm:$0xff]
        %v296 = vld [vmem:[%s2 + $0xe8] sm:$0xff]
        %v297 = vld [vmem:[%s2 + $0xf0] sm:$0xff]
        %v298 = vld [vmem:[%s2 + $0xf8] sm:$0xff]
        %v299 = vld [vmem:[%s2 + $0x100] sm:$0xff]
        %v300 = vld [vmem:[%s2 + $0x108] sm:$0xff]
        %v301 = vld [vmem:[%s2 + $0x110] sm:$0xff]
        %v302 = vld [vmem:[%s2 + $0x118] sm:$0xff]
        %v303 = vld [vmem:[%s2 + $0x120] sm:$0xff]
        %v304 = vld [vmem:[%s2 + $0x128] sm:$0xff]
        %v305 = vld [vmem:[%s2 + $0x130] sm:$0xff]
        %v306 = vld [vmem:[%s2 + $0x138] sm:$0xff]
        %v307 = vld [vmem:[%s2 + $0x140] sm:$0xff]
        %v308 = vld [vmem:[%s2 + $0x148] sm:$0xff]
        %v309 = vld [vmem:[%s2 + $0x150] sm:$0xff]
        %v310 = vld [vmem:[%s2 + $0x158] sm:$0xff]
        %v311 = vld [vmem:[%s2 + $0x160] sm:$0xff]
        %v312 = vld [vmem:[%s2 + $0x168] sm:$0xff]
        %v313 = vld [vmem:[%s2 + $0x170] sm:$0xff]
        %v314 = vld [vmem:[%s2 + $0x178] sm:$0xff]
        %v315 = vld [vmem:[%s2 + $0x180] sm:$0xff]
        %v316 = vld [vmem:[%s2 + $0x188] sm:$0xff]
        %v317 = vld [vmem:[%s2 + $0x190] sm:$0xff]
        %v318 = vld [vmem:[%s2 + $0x198] sm:$0xff]
        %v319 = vld [vmem:[%s2 + $0x1a0] sm:$0xff]
        %v320 = vld [vmem:[%s2 + $0x1a8] sm:$0xff]
        %v321 = vld [vmem:[%s2 + $0x1b0] sm:$0xff]
        %v322 = vld [vmem:[%s2 + $0x1b8] sm:$0xff]
        %v323 = vld [vmem:[%s2 + $0x1c0] sm:$0xff]
        %v324 = vld [vmem:[%s2 + $0x1c8] sm:$0xff]
        %v325 = vld [vmem:[%s2 + $0x1d0] sm:$0xff]
        %v326 = vld [vmem:[%s2 + $0x1d8] sm:$0xff]
        %v327 = vld [vmem:[%s2 + $0x1e0] sm:$0xff]
        %v328 = vld [vmem:[%s2 + $0x1e8] sm:$0xff]
        %v329 = vld [vmem:[%s2 + $0x1f0] sm:$0xff]
        %v330 = vld [vmem:[%s2 + $0x1f8] sm:$0xff]
        %v331 = vld [vmem:[%s3] sm:$0xff]
        %v332 = vld [vmem:[%s3 + $0x8] sm:$0xff]
        %v333 = vld [vmem:[%s3 + $0x10] sm:$0xff]
        %v334 = vld [vmem:[%s3 + $0x18] sm:$0xff]
        %v335 = vld [vmem:[%s3 + $0x28] sm:$0xff]
        %v336 = vld [vmem:[%s3 + $0x30] sm:$0xff]
        %v337 = vld [vmem:[%s3 + $0x38] sm:$0xff]
        %v338 = vld [vmem:[%s3 + $0x40] sm:$0xff]
        %v339 = vld [vmem:[%s3 + $0x20] sm:$0xff]
        %v340 = vld [vmem:[%s3 + $0x48] sm:$0xff]
        %vm341 = vcmask 130048
        %v343 = vsel %vm341, %v255, 0
        %v346 = vsel %vm341, %v256, 0
        %v349 = vsel %vm341, %v257, 0
        %v352 = vsel %vm341, %v258, 0
        %354 = vmatprep.subr.mxu0 0.0
        %355 = vmatpush1.msra.mxu0 %v249
        %356 = vmatprep.subr.mxu0 0.0
        %357 = vmatpush1.msra.mxu0 %v250
        %358 = vmatprep.subr.mxu0 0.0
        %359 = vmatpush1.msra.mxu0 0.0
        %360 = vmatprep.subr.mxu0 0.0
        %361 = vmatpush1.msra.mxu0 0.0
        %362 = vmatprep.subr.mxu0 0.0
        %363 = vmatpush1.msra.mxu0 0.0
        %364 = vmatprep.subr.mxu0 0.0
        %365 = vmatpush1.msra.mxu0 0.0
        %366 = vmatprep.subr.mxu0 0.0
        %367 = vmatpush1.msra.mxu0 0.0
        %368 = vmatprep.subr.mxu0 0.0
        %369 = vmatpush1.msra.mxu0 0.0
        %370 = vmatprep.subr.mxu0 0.0
        %371 = vmatpush1.msra.mxu0 0.0
        %372 = vmatprep.subr.mxu0 0.0
        %373 = vmatpush1.msra.mxu0 0.0
        %374 = vmatprep.subr.mxu0 0.0
        %375 = vmatpush1.msra.mxu0 0.0
        %376 = vmatprep.subr.mxu0 0.0
        %377 = vmatpush1.msra.mxu0 0.0
        %378 = vmatprep.subr.mxu0 0.0
        %379 = vmatpush1.msra.mxu0 0.0
        %380 = vmatprep.subr.mxu0 0.0
        %381 = vmatpush1.msra.mxu0 0.0
        %382 = vmatprep.subr.mxu0 0.0
        %383 = vmatpush1.msra.mxu0 0.0
        %384 = vmatprep.subr.mxu0 0.0
        %385 = vmatpush1.msra.mxu0 0.0
        %386 = vmatprep.subr.mxu0 0.0
        %387 = vmatpush1.msra.mxu0 0.0
        %388 = vmatprep.subr.mxu0 0.0
        %389 = vmatpush1.msra.mxu0 0.0
        %390 = vmatprep.subr.mxu0 0.0
        %391 = vmatpush1.msra.mxu0 0.0
        %392 = vmatprep.subr.mxu0 0.0
        %393 = vmatpush1.msra.mxu0 0.0
        %394 = vmatprep.subr.mxu0 0.0
        %395 = vmatpush1.msra.mxu0 0.0
        %396 = vmatprep.subr.mxu0 0.0
        %397 = vmatpush1.msra.mxu0 0.0
        %398 = vmatprep.subr.mxu0 0.0
        %399 = vmatpush1.msra.mxu0 0.0
        %400 = vmatprep.subr.mxu0 0.0
        %401 = vmatpush1.msra.mxu0 0.0
        %402 = vmatprep.subr.mxu0 0.0
        %403 = vmatpush1.msra.mxu0 0.0
        %404 = vmatprep.subr.mxu0 0.0
        %405 = vmatpush1.msra.mxu0 0.0
        %406 = vmatprep.subr.mxu0 0.0
        %407 = vmatpush1.msra.mxu0 0.0
        %408 = vmatprep.subr.mxu0 0.0
        %409 = vmatpush1.msra.mxu0 0.0
        %410 = vmatprep.subr.mxu0 0.0
        %411 = vmatpush1.msra.mxu0 0.0
        %412 = vmatprep.subr.mxu0 0.0
        %413 = vmatpush1.msra.mxu0 0.0
        %414 = vmatprep.subr.mxu0 0.0
        %415 = vmatpush1.msra.mxu0 0.0
        %416 = vmatprep.subr.mxu0 0.0
        %417 = vmatpush1.msra.mxu0 0.0
        %418 = vmatprep.mubr.f32.mxu0 0.0
        %419 = vmatmul.mubr.f32.gmra.mrb[0].mxu0 %v343
        %v420 = vpop.f32.mrb[0].mxu0
        %v421 = vadd.f32 0.0, %v420
        %v422 = vpop.f32.mrb[0].mxu0
        %423 = vmatprep.mubr.f32.mxu0 0.0
        %424 = vmatmul.mubr.f32.gmra.mrb[0].mxu0 %v346
        %v425 = vpop.f32.mrb[0].mxu0
        %v426 = vadd.f32 0.0, %v425
        %v427 = vpop.f32.mrb[0].mxu0
        %428 = vmatprep.mubr.f32.mxu0 0.0
        %429 = vmatmul.mubr.f32.gmra.mrb[0].mxu0 %v349
        %v430 = vpop.f32.mrb[0].mxu0
        %v431 = vadd.f32 0.0, %v430
        %v432 = vpop.f32.mrb[0].mxu0
        %433 = vmatprep.mubr.f32.mxu0 0.0
        %434 = vmatmul.mubr.f32.gmra.mrb[0].mxu0 %v352
        %v435 = vpop.f32.mrb[0].mxu0
        %v436 = vadd.f32 0.0, %v435
        %v437 = vpop.f32.mrb[0].mxu0
        %438 = vdwg.mxu0
        %v439 = vmul.f32 %v421, 0.5
        %v440 = vmul.f32 %v426, 0.5
        %v441 = vmul.f32 %v431, 0.5
        %v442 = vmul.f32 %v436, 0.5
        %v443 = vtanh.pop %v439
        %v444 = vtanh.pop %v440
        %v445 = vtanh.pop %v441
        %v446 = vtanh.pop %v442
        %v447 = vmul.f32 %v443, 0.5
        %v448 = vmul.f32 %v444, 0.5
        %v449 = vmul.f32 %v445, 0.5
        %v450 = vmul.f32 %v446, 0.5
        %v451 = vadd.f32 %v447, 0.5
        %v452 = vadd.f32 %v448, 0.5
        %v453 = vadd.f32 %v449, 0.5
        %v454 = vadd.f32 %v450, 0.5
        %vm455 = vcmask 72704
        %v457 = vsel %vm455, %v263, 0
        %v460 = vsel %vm455, %v264, 0
        %v463 = vsel %vm455, %v265, 0
        %v466 = vsel %vm455, %v266, 0
        %vm468 = vcmask 1040384
        %v470 = vsel %vm468, %v254, 0
        %472 = vmatprep.subr.mxu0 0.0
        %473 = vmatpush1.msra.mxu0 %v253
        %474 = vmatprep.subr.mxu0 0.0
        %475 = vmatpush1.msra.mxu0 %v470
        %476 = vmatprep.subr.mxu0 0.0
        %477 = vmatpush1.msra.mxu0 0.0
        %478 = vmatprep.subr.mxu0 0.0
        %479 = vmatpush1.msra.mxu0 0.0
        %480 = vmatprep.subr.mxu0 0.0
        %481 = vmatpush1.msra.mxu0 0.0
        %482 = vmatprep.subr.mxu0 0.0
        %483 = vmatpush1.msra.mxu0 0.0
        %484 = vmatprep.subr.mxu0 0.0
        %485 = vmatpush1.msra.mxu0 0.0
        %486 = vmatprep.subr.mxu0 0.0
        %487 = vmatpush1.msra.mxu0 0.0
        %488 = vmatprep.subr.mxu0 0.0
        %489 = vmatpush1.msra.mxu0 0.0
        %490 = vmatprep.subr.mxu0 0.0
        %491 = vmatpush1.msra.mxu0 0.0
        %492 = vmatprep.subr.mxu0 0.0
        %493 = vmatpush1.msra.mxu0 0.0
        %494 = vmatprep.subr.mxu0 0.0
        %495 = vmatpush1.msra.mxu0 0.0
        %496 = vmatprep.subr.mxu0 0.0
        %497 = vmatpush1.msra.mxu0 0.0
        %498 = vmatprep.subr.mxu0 0.0
        %499 = vmatpush1.msra.mxu0 0.0
        %500 = vmatprep.subr.mxu0 0.0
        %501 = vmatpush1.msra.mxu0 0.0
        %502 = vmatprep.subr.mxu0 0.0
        %503 = vmatpush1.msra.mxu0 0.0
        %504 = vmatprep.subr.mxu0 0.0
        %505 = vmatpush1.msra.mxu0 0.0
        %506 = vmatprep.subr.mxu0 0.0
        %507 = vmatpush1.msra.mxu0 0.0
        %508 = vmatprep.subr.mxu0 0.0
        %509 = vmatpush1.msra.mxu0 0.0
        %510 = vmatprep.subr.mxu0 0.0
        %511 = vmatpush1.msra.mxu0 0.0
        %512 = vmatprep.subr.mxu0 0.0
        %513 = vmatpush1.msra.mxu0 0.0
        %514 = vmatprep.subr.mxu0 0.0
        %515 = vmatpush1.msra.mxu0 0.0
        %516 = vmatprep.subr.mxu0 0.0
        %517 = vmatpush1.msra.mxu0 0.0
        %518 = vmatprep.subr.mxu0 0.0
        %519 = vmatpush1.msra.mxu0 0.0
        %520 = vmatprep.subr.mxu0 0.0
        %521 = vmatpush1.msra.mxu0 0.0
        %522 = vmatprep.subr.mxu0 0.0
        %523 = vmatpush1.msra.mxu0 0.0
        %524 = vmatprep.subr.mxu0 0.0
        %525 = vmatpush1.msra.mxu0 0.0
        %526 = vmatprep.subr.mxu0 0.0
        %527 = vmatpush1.msra.mxu0 0.0
        %528 = vmatprep.subr.mxu0 0.0
        %529 = vmatpush1.msra.mxu0 0.0
        %530 = vmatprep.subr.mxu0 0.0
        %531 = vmatpush1.msra.mxu0 0.0
        %532 = vmatprep.subr.mxu0 0.0
        %533 = vmatpush1.msra.mxu0 0.0
        %534 = vmatprep.subr.mxu0 0.0
        %535 = vmatpush1.msra.mxu0 0.0
        %536 = vmatprep.mubr.f32.mxu0 0.0
        %537 = vmatmul.mubr.f32.gmra.mrb[0].mxu0 %v457
        %v538 = vpop.f32.mrb[0].mxu0
        %v539 = vadd.f32 0.0, %v538
        %v540 = vpop.f32.mrb[0].mxu0
        %541 = vmatprep.mubr.f32.mxu0 0.0
        %542 = vmatmul.mubr.f32.gmra.mrb[0].mxu0 %v460
        %v543 = vpop.f32.mrb[0].mxu0
        %v544 = vadd.f32 0.0, %v543
        %v545 = vpop.f32.mrb[0].mxu0
        %546 = vmatprep.mubr.f32.mxu0 0.0
        %547 = vmatmul.mubr.f32.gmra.mrb[0].mxu0 %v463
        %v548 = vpop.f32.mrb[0].mxu0
        %v549 = vadd.f32 0.0, %v548
        %v550 = vpop.f32.mrb[0].mxu0
        %551 = vmatprep.mubr.f32.mxu0 0.0
        %552 = vmatmul.mubr.f32.gmra.mrb[0].mxu0 %v466
        %v553 = vpop.f32.mrb[0].mxu0
        %v554 = vadd.f32 0.0, %v553
        %v555 = vpop.f32.mrb[0].mxu0
        %556 = vdwg.mxu0
        %vm557 = vcmask 261120
        %v559 = vsel %vm557, %v259, 0
        %v562 = vsel %vm557, %v260, 0
        %v565 = vsel %vm557, %v261, 0
        %v568 = vsel %vm557, %v262, 0
        %570 = vmatprep.subr.mxu0 0.0
        %571 = vmatpush1.msra.mxu0 %v451
        %572 = vmatprep.subr.mxu0 0.0
        %573 = vmatpush1.msra.mxu0 %v452
        %574 = vmatprep.subr.mxu0 0.0
        %575 = vmatpush1.msra.mxu0 %v453
        %576 = vmatprep.subr.mxu0 0.0
        %577 = vmatpush1.msra.mxu0 %v454
        %578 = vmatprep.subr.mxu0 0.0
        %579 = vmatpush1.msra.mxu0 0.0
        %580 = vmatprep.subr.mxu0 0.0
        %581 = vmatpush1.msra.mxu0 0.0
        %582 = vmatprep.subr.mxu0 0.0
        %583 = vmatpush1.msra.mxu0 0.0
        %584 = vmatprep.subr.mxu0 0.0
        %585 = vmatpush1.msra.mxu0 0.0
        %586 = vmatprep.subr.mxu0 0.0
        %587 = vmatpush1.msra.mxu0 0.0
        %588 = vmatprep.subr.mxu0 0.0
        %589 = vmatpush1.msra.mxu0 0.0
        %590 = vmatprep.subr.mxu0 0.0
        %591 = vmatpush1.msra.mxu0 0.0
        %592 = vmatprep.subr.mxu0 0.0
        %593 = vmatpush1.msra.mxu0 0.0
        %594 = vmatprep.subr.mxu0 0.0
        %595 = vmatpush1.msra.mxu0 0.0
        %596 = vmatprep.subr.mxu0 0.0
        %597 = vmatpush1.msra.mxu0 0.0
        %598 = vmatprep.subr.mxu0 0.0
        %599 = vmatpush1.msra.mxu0 0.0
        %600 = vmatprep.subr.mxu0 0.0
        %601 = vmatpush1.msra.mxu0 0.0
        %602 = vmatprep.subr.mxu0 0.0
        %603 = vmatpush1.msra.mxu0 0.0
        %604 = vmatprep.subr.mxu0 0.0
        %605 = vmatpush1.msra.mxu0 0.0
        %606 = vmatprep.subr.mxu0 0.0
        %607 = vmatpush1.msra.mxu0 0.0
        %608 = vmatprep.subr.mxu0 0.0
        %609 = vmatpush1.msra.mxu0 0.0
        %610 = vmatprep.subr.mxu0 0.0
        %611 = vmatpush1.msra.mxu0 0.0
        %612 = vmatprep.subr.mxu0 0.0
        %613 = vmatpush1.msra.mxu0 0.0
        %614 = vmatprep.subr.mxu0 0.0
        %615 = vmatpush1.msra.mxu0 0.0
        %616 = vmatprep.subr.mxu0 0.0
        %617 = vmatpush1.msra.mxu0 0.0
        %618 = vmatprep.subr.mxu0 0.0
        %619 = vmatpush1.msra.mxu0 0.0
        %620 = vmatprep.subr.mxu0 0.0
        %621 = vmatpush1.msra.mxu0 0.0
        %622 = vmatprep.subr.mxu0 0.0
        %623 = vmatpush1.msra.mxu0 0.0
        %624 = vmatprep.subr.mxu0 0.0
        %625 = vmatpush1.msra.mxu0 0.0
        %626 = vmatprep.subr.mxu0 0.0
        %627 = vmatpush1.msra.mxu0 0.0
        %628 = vmatprep.subr.mxu0 0.0
        %629 = vmatpush1.msra.mxu0 0.0
        %630 = vmatprep.subr.mxu0 0.0
        %631 = vmatpush1.msra.mxu0 0.0
        %632 = vmatprep.subr.mxu0 0.0
        %633 = vmatpush1.msra.mxu0 0.0
        %634 = vmatprep.mubr.f32.mxu0 0.0
        %635 = vmatmul.mubr.f32.gmra.mrb[0].mxu0 %v559
        %v636 = vpop.f32.mrb[0].mxu0
        %v637 = vadd.f32 %v539, %v636
        %v638 = vpop.f32.mrb[0].mxu0
        %639 = vmatprep.mubr.f32.mxu0 0.0
        %640 = vmatmul.mubr.f32.gmra.mrb[0].mxu0 %v562
        %v641 = vpop.f32.mrb[0].mxu0
        %v642 = vadd.f32 %v544, %v641
        %v643 = vpop.f32.mrb[0].mxu0
        %644 = vmatprep.mubr.f32.mxu0 0.0
        %645 = vmatmul.mubr.f32.gmra.mrb[0].mxu0 %v565
        %v646 = vpop.f32.mrb[0].mxu0
        %v647 = vadd.f32 %v549, %v646
        %v648 = vpop.f32.mrb[0].mxu0
        %649 = vmatprep.mubr.f32.mxu0 0.0
        %650 = vmatmul.mubr.f32.gmra.mrb[0].mxu0 %v568
        %v651 = vpop.f32.mrb[0].mxu0
        %v652 = vadd.f32 %v554, %v651
        %v653 = vpop.f32.mrb[0].mxu0
        %654 = vdwg.mxu0
        %v655 = vmul.f32 %v637, 0.5
        %v656 = vmul.f32 %v642, 0.5
        %v657 = vmul.f32 %v647, 0.5
        %v658 = vmul.f32 %v652, 0.5
        %v659 = vtanh.pop %v655
        %v660 = vtanh.pop %v656
        %v661 = vtanh.pop %v657
        %v662 = vtanh.pop %v658
        %v663 = vmul.f32 %v659, 0.5
        %v664 = vmul.f32 %v660, 0.5
        %v665 = vmul.f32 %v661, 0.5
        %v666 = vmul.f32 %v662, 0.5
        %v667 = vadd.f32 %v663, 0.5
        %v668 = vadd.f32 %v664, 0.5
        %v669 = vadd.f32 %v665, 0.5
        %v670 = vadd.f32 %v666, 0.5
        %672 = vset.pattern.permute.xlu0 32
        %673 = vperm.xlu0 %672, %v267
        %v674 = vpop.permute.xlu0 %673
        %677 = vset.pattern.permute.xlu0 32
        %678 = vperm.xlu0 %677, %v268
        %v679 = vpop.permute.xlu0 %678
        %682 = vset.pattern.permute.xlu0 32
        %683 = vperm.xlu0 %682, %v269
        %v684 = vpop.permute.xlu0 %683
        %687 = vset.pattern.permute.xlu0 32
        %688 = vperm.xlu0 %687, %v270
        %v689 = vpop.permute.xlu0 %688
        %692 = vset.pattern.permute.xlu0 32
        %693 = vperm.xlu0 %692, %v271
        %v694 = vpop.permute.xlu0 %693
        %697 = vset.pattern.permute.xlu0 32
        %698 = vperm.xlu0 %697, %v272
        %v699 = vpop.permute.xlu0 %698
        %702 = vset.pattern.permute.xlu0 32
        %703 = vperm.xlu0 %702, %v273
        %v704 = vpop.permute.xlu0 %703
        %707 = vset.pattern.permute.xlu0 32
        %708 = vperm.xlu0 %707, %v274
        %v709 = vpop.permute.xlu0 %708
        %712 = vset.pattern.permute.xlu0 32
        %713 = vperm.xlu0 %712, %v275
        %v714 = vpop.permute.xlu0 %713
        %717 = vset.pattern.permute.xlu0 32
        %718 = vperm.xlu0 %717, %v276
        %v719 = vpop.permute.xlu0 %718
        %722 = vset.pattern.permute.xlu0 32
        %723 = vperm.xlu0 %722, %v277
        %v724 = vpop.permute.xlu0 %723
        %727 = vset.pattern.permute.xlu0 32
        %728 = vperm.xlu0 %727, %v278
        %v729 = vpop.permute.xlu0 %728
        %732 = vset.pattern.permute.xlu0 32
        %733 = vperm.xlu0 %732, %v279
        %v734 = vpop.permute.xlu0 %733
        %737 = vset.pattern.permute.xlu0 32
        %738 = vperm.xlu0 %737, %v280
        %v739 = vpop.permute.xlu0 %738
        %742 = vset.pattern.permute.xlu0 32
        %743 = vperm.xlu0 %742, %v281
        %v744 = vpop.permute.xlu0 %743
        %747 = vset.pattern.permute.xlu0 32
        %748 = vperm.xlu0 %747, %v282
        %v749 = vpop.permute.xlu0 %748
        %752 = vset.pattern.permute.xlu0 32
        %753 = vperm.xlu0 %752, %v283
        %v754 = vpop.permute.xlu0 %753
        %757 = vset.pattern.permute.xlu0 32
        %758 = vperm.xlu0 %757, %v284
        %v759 = vpop.permute.xlu0 %758
        %762 = vset.pattern.permute.xlu0 32
        %763 = vperm.xlu0 %762, %v285
        %v764 = vpop.permute.xlu0 %763
        %767 = vset.pattern.permute.xlu0 32
        %768 = vperm.xlu0 %767, %v286
        %v769 = vpop.permute.xlu0 %768
        %772 = vset.pattern.permute.xlu0 32
        %773 = vperm.xlu0 %772, %v287
        %v774 = vpop.permute.xlu0 %773
        %777 = vset.pattern.permute.xlu0 32
        %778 = vperm.xlu0 %777, %v288
        %v779 = vpop.permute.xlu0 %778
        %782 = vset.pattern.permute.xlu0 32
        %783 = vperm.xlu0 %782, %v289
        %v784 = vpop.permute.xlu0 %783
        %787 = vset.pattern.permute.xlu0 32
        %788 = vperm.xlu0 %787, %v290
        %v789 = vpop.permute.xlu0 %788
        %792 = vset.pattern.permute.xlu0 32
        %793 = vperm.xlu0 %792, %v291
        %v794 = vpop.permute.xlu0 %793
        %797 = vset.pattern.permute.xlu0 32
        %798 = vperm.xlu0 %797, %v292
        %v799 = vpop.permute.xlu0 %798
        %802 = vset.pattern.permute.xlu0 32
        %803 = vperm.xlu0 %802, %v293
        %v804 = vpop.permute.xlu0 %803
        %807 = vset.pattern.permute.xlu0 32
        %808 = vperm.xlu0 %807, %v294
        %v809 = vpop.permute.xlu0 %808
        %812 = vset.pattern.permute.xlu0 32
        %813 = vperm.xlu0 %812, %v295
        %v814 = vpop.permute.xlu0 %813
        %817 = vset.pattern.permute.xlu0 32
        %818 = vperm.xlu0 %817, %v296
        %v819 = vpop.permute.xlu0 %818
        %822 = vset.pattern.permute.xlu0 32
        %823 = vperm.xlu0 %822, %v297
        %v824 = vpop.permute.xlu0 %823
        %827 = vset.pattern.permute.xlu0 32
        %828 = vperm.xlu0 %827, %v298
        %v829 = vpop.permute.xlu0 %828
        %832 = vset.pattern.permute.xlu0 32
        %833 = vperm.xlu0 %832, %v299
        %v834 = vpop.permute.xlu0 %833
        %837 = vset.pattern.permute.xlu0 32
        %838 = vperm.xlu0 %837, %v300
        %v839 = vpop.permute.xlu0 %838
        %842 = vset.pattern.permute.xlu0 32
        %843 = vperm.xlu0 %842, %v301
        %v844 = vpop.permute.xlu0 %843
        %847 = vset.pattern.permute.xlu0 32
        %848 = vperm.xlu0 %847, %v302
        %v849 = vpop.permute.xlu0 %848
        %852 = vset.pattern.permute.xlu0 32
        %853 = vperm.xlu0 %852, %v303
        %v854 = vpop.permute.xlu0 %853
        %857 = vset.pattern.permute.xlu0 32
        %858 = vperm.xlu0 %857, %v304
        %v859 = vpop.permute.xlu0 %858
        %862 = vset.pattern.permute.xlu0 32
        %863 = vperm.xlu0 %862, %v305
        %v864 = vpop.permute.xlu0 %863
        %867 = vset.pattern.permute.xlu0 32
        %868 = vperm.xlu0 %867, %v306
        %v869 = vpop.permute.xlu0 %868
        %872 = vset.pattern.permute.xlu0 32
        %873 = vperm.xlu0 %872, %v307
        %v874 = vpop.permute.xlu0 %873
        %877 = vset.pattern.permute.xlu0 32
        %878 = vperm.xlu0 %877, %v308
        %v879 = vpop.permute.xlu0 %878
        %882 = vset.pattern.permute.xlu0 32
        %883 = vperm.xlu0 %882, %v309
        %v884 = vpop.permute.xlu0 %883
        %887 = vset.pattern.permute.xlu0 32
        %888 = vperm.xlu0 %887, %v310
        %v889 = vpop.permute.xlu0 %888
        %892 = vset.pattern.permute.xlu0 32
        %893 = vperm.xlu0 %892, %v311
        %v894 = vpop.permute.xlu0 %893
        %897 = vset.pattern.permute.xlu0 32
        %898 = vperm.xlu0 %897, %v312
        %v899 = vpop.permute.xlu0 %898
        %902 = vset.pattern.permute.xlu0 32
        %903 = vperm.xlu0 %902, %v313
        %v904 = vpop.permute.xlu0 %903
        %907 = vset.pattern.permute.xlu0 32
        %908 = vperm.xlu0 %907, %v314
        %v909 = vpop.permute.xlu0 %908
        %912 = vset.pattern.permute.xlu0 32
        %913 = vperm.xlu0 %912, %v315
        %v914 = vpop.permute.xlu0 %913
        %917 = vset.pattern.permute.xlu0 32
        %918 = vperm.xlu0 %917, %v316
        %v919 = vpop.permute.xlu0 %918
        %922 = vset.pattern.permute.xlu0 32
        %923 = vperm.xlu0 %922, %v317
        %v924 = vpop.permute.xlu0 %923
        %927 = vset.pattern.permute.xlu0 32
        %928 = vperm.xlu0 %927, %v318
        %v929 = vpop.permute.xlu0 %928
        %932 = vset.pattern.permute.xlu0 32
        %933 = vperm.xlu0 %932, %v319
        %v934 = vpop.permute.xlu0 %933
        %937 = vset.pattern.permute.xlu0 32
        %938 = vperm.xlu0 %937, %v320
        %v939 = vpop.permute.xlu0 %938
        %942 = vset.pattern.permute.xlu0 32
        %943 = vperm.xlu0 %942, %v321
        %v944 = vpop.permute.xlu0 %943
        %947 = vset.pattern.permute.xlu0 32
        %948 = vperm.xlu0 %947, %v322
        %v949 = vpop.permute.xlu0 %948
        %952 = vset.pattern.permute.xlu0 32
        %953 = vperm.xlu0 %952, %v323
        %v954 = vpop.permute.xlu0 %953
        %957 = vset.pattern.permute.xlu0 32
        %958 = vperm.xlu0 %957, %v324
        %v959 = vpop.permute.xlu0 %958
        %962 = vset.pattern.permute.xlu0 32
        %963 = vperm.xlu0 %962, %v325
        %v964 = vpop.permute.xlu0 %963
        %967 = vset.pattern.permute.xlu0 32
        %968 = vperm.xlu0 %967, %v326
        %v969 = vpop.permute.xlu0 %968
        %972 = vset.pattern.permute.xlu0 32
        %973 = vperm.xlu0 %972, %v327
        %v974 = vpop.permute.xlu0 %973
        %977 = vset.pattern.permute.xlu0 32
        %978 = vperm.xlu0 %977, %v328
        %v979 = vpop.permute.xlu0 %978
        %982 = vset.pattern.permute.xlu0 32
        %983 = vperm.xlu0 %982, %v329
        %v984 = vpop.permute.xlu0 %983
        %987 = vset.pattern.permute.xlu0 32
        %988 = vperm.xlu0 %987, %v330
        %v989 = vpop.permute.xlu0 %988
        %v991 = vsel %vm557, %v267, 0
        %v993 = vsel %vm557, %v268, 0
        %v995 = vsel %vm557, %v269, 0
        %v997 = vsel %vm557, %v270, 0
        %v999 = vsel %vm557, %v271, 0
        %v1001 = vsel %vm557, %v272, 0
        %v1003 = vsel %vm557, %v273, 0
        %v1005 = vsel %vm557, %v274, 0
        %v1007 = vsel %vm557, %v275, 0
        %v1009 = vsel %vm557, %v276, 0
        %v1011 = vsel %vm557, %v277, 0
        %v1013 = vsel %vm557, %v278, 0
        %v1015 = vsel %vm557, %v279, 0
        %v1017 = vsel %vm557, %v280, 0
        %v1019 = vsel %vm557, %v281, 0
        %v1021 = vsel %vm557, %v282, 0
        %v1023 = vsel %vm557, %v283, 0
        %v1025 = vsel %vm557, %v284, 0
        %v1027 = vsel %vm557, %v285, 0
        %v1029 = vsel %vm557, %v286, 0
        %v1031 = vsel %vm557, %v287, 0
        %v1033 = vsel %vm557, %v288, 0
        %v1035 = vsel %vm557, %v289, 0
        %v1037 = vsel %vm557, %v290, 0
        %v1039 = vsel %vm557, %v291, 0
        %v1041 = vsel %vm557, %v292, 0
        %v1043 = vsel %vm557, %v293, 0
        %v1045 = vsel %vm557, %v294, 0
        %v1047 = vsel %vm557, %v295, 0
        %v1049 = vsel %vm557, %v296, 0
        %v1051 = vsel %vm557, %v297, 0
        %v1053 = vsel %vm557, %v298, 0
        %v1055 = vsel %vm557, %v299, 0
        %v1057 = vsel %vm557, %v300, 0
        %v1059 = vsel %vm557, %v301, 0
        %v1061 = vsel %vm557, %v302, 0
        %v1063 = vsel %vm557, %v303, 0
        %v1065 = vsel %vm557, %v304, 0
        %v1067 = vsel %vm557, %v305, 0
        %v1069 = vsel %vm557, %v306, 0
        %v1071 = vsel %vm557, %v307, 0
        %v1073 = vsel %vm557, %v308, 0
        %v1075 = vsel %vm557, %v309, 0
        %v1077 = vsel %vm557, %v310, 0
        %v1079 = vsel %vm557, %v311, 0
        %v1081 = vsel %vm557, %v312, 0
        %v1083 = vsel %vm557, %v313, 0
        %v1085 = vsel %vm557, %v314, 0
        %v1087 = vsel %vm557, %v315, 0
        %v1089 = vsel %vm557, %v316, 0
        %v1091 = vsel %vm557, %v317, 0
        %v1093 = vsel %vm557, %v318, 0
        %v1095 = vsel %vm557, %v319, 0
        %v1097 = vsel %vm557, %v320, 0
        %v1099 = vsel %vm557, %v321, 0
        %v1101 = vsel %vm557, %v322, 0
        %v1103 = vsel %vm557, %v323, 0
        %v1105 = vsel %vm557, %v324, 0
        %v1107 = vsel %vm557, %v325, 0
        %v1109 = vsel %vm557, %v326, 0
        %v1111 = vsel %vm557, %v327, 0
        %v1113 = vsel %vm557, %v328, 0
        %v1115 = vsel %vm557, %v329, 0
        %v1117 = vsel %vm557, %v330, 0
        %1119 = vmatprep.subr.mxu0 0.0
        %1120 = vmatpush1.msra.mxu0 %v667
        %1121 = vmatprep.subr.mxu0 0.0
        %1122 = vmatpush1.msra.mxu0 %v668
        %1123 = vmatprep.subr.mxu0 0.0
        %1124 = vmatpush1.msra.mxu0 %v669
        %1125 = vmatprep.subr.mxu0 0.0
        %1126 = vmatpush1.msra.mxu0 %v670
        %1127 = vmatprep.subr.mxu0 0.0
        %1128 = vmatpush1.msra.mxu0 0.0
        %1129 = vmatprep.subr.mxu0 0.0
        %1130 = vmatpush1.msra.mxu0 0.0
        %1131 = vmatprep.subr.mxu0 0.0
        %1132 = vmatpush1.msra.mxu0 0.0
        %1133 = vmatprep.subr.mxu0 0.0
        %1134 = vmatpush1.msra.mxu0 0.0
        %1135 = vmatprep.subr.mxu0 0.0
        %1136 = vmatpush1.msra.mxu0 0.0
        %1137 = vmatprep.subr.mxu0 0.0
        %1138 = vmatpush1.msra.mxu0 0.0
        %1139 = vmatprep.subr.mxu0 0.0
        %1140 = vmatpush1.msra.mxu0 0.0
        %1141 = vmatprep.subr.mxu0 0.0
        %1142 = vmatpush1.msra.mxu0 0.0
        %1143 = vmatprep.subr.mxu0 0.0
        %1144 = vmatpush1.msra.mxu0 0.0
        %1145 = vmatprep.subr.mxu0 0.0
        %1146 = vmatpush1.msra.mxu0 0.0
        %1147 = vmatprep.subr.mxu0 0.0
        %1148 = vmatpush1.msra.mxu0 0.0
        %1149 = vmatprep.subr.mxu0 0.0
        %1150 = vmatpush1.msra.mxu0 0.0
        %1151 = vmatprep.subr.mxu0 0.0
        %1152 = vmatpush1.msra.mxu0 0.0
        %1153 = vmatprep.subr.mxu0 0.0
        %1154 = vmatpush1.msra.mxu0 0.0
        %1155 = vmatprep.subr.mxu0 0.0
        %1156 = vmatpush1.msra.mxu0 0.0
        %1157 = vmatprep.subr.mxu0 0.0
        %1158 = vmatpush1.msra.mxu0 0.0
        %1159 = vmatprep.subr.mxu0 0.0
        %1160 = vmatpush1.msra.mxu0 0.0
        %1161 = vmatprep.subr.mxu0 0.0
        %1162 = vmatpush1.msra.mxu0 0.0
        %1163 = vmatprep.subr.mxu0 0.0
        %1164 = vmatpush1.msra.mxu0 0.0
        %1165 = vmatprep.subr.mxu0 0.0
        %1166 = vmatpush1.msra.mxu0 0.0
        %1167 = vmatprep.subr.mxu0 0.0
        %1168 = vmatpush1.msra.mxu0 0.0
        %1169 = vmatprep.subr.mxu0 0.0
        %1170 = vmatpush1.msra.mxu0 0.0
        %1171 = vmatprep.subr.mxu0 0.0
        %1172 = vmatpush1.msra.mxu0 0.0
        %1173 = vmatprep.subr.mxu0 0.0
        %1174 = vmatpush1.msra.mxu0 0.0
        %1175 = vmatprep.subr.mxu0 0.0
        %1176 = vmatpush1.msra.mxu0 0.0
        %1177 = vmatprep.subr.mxu0 0.0
        %1178 = vmatpush1.msra.mxu0 0.0
        %1179 = vmatprep.subr.mxu0 0.0
        %1180 = vmatpush1.msra.mxu0 0.0
        %1181 = vmatprep.subr.mxu0 0.0
        %1182 = vmatpush1.msra.mxu0 0.0
        %1183 = vmatprep.mubr.f32.mxu0 0.0
        %1184 = vmatmul.mubr.f32.gmra.mrb[0].mxu0 %v991
        %v1185 = vpop.f32.mrb[0].mxu0
        %v1186 = vadd.f32 %v674, %v1185
        %v1187 = vpop.f32.mrb[0].mxu0
        %1188 = vmatprep.mubr.f32.mxu0 0.0
        %1189 = vmatmul.mubr.f32.gmra.mrb[0].mxu0 %v993
        %v1190 = vpop.f32.mrb[0].mxu0
        %v1191 = vadd.f32 %v679, %v1190
        %v1192 = vpop.f32.mrb[0].mxu0
        %1193 = vmatprep.mubr.f32.mxu0 0.0
        %1194 = vmatmul.mubr.f32.gmra.mrb[0].mxu0 %v995
        %v1195 = vpop.f32.mrb[0].mxu0
        %v1196 = vadd.f32 %v684, %v1195
        %v1197 = vpop.f32.mrb[0].mxu0
        %1198 = vmatprep.mubr.f32.mxu0 0.0
        %1199 = vmatmul.mubr.f32.gmra.mrb[0].mxu0 %v997
        %v1200 = vpop.f32.mrb[0].mxu0
        %v1201 = vadd.f32 %v689, %v1200
        %v1202 = vpop.f32.mrb[0].mxu0
        %1203 = vmatprep.mubr.f32.mxu0 0.0
        %1204 = vmatmul.mubr.f32.gmra.mrb[0].mxu0 %v999
        %v1205 = vpop.f32.mrb[0].mxu0
        %v1206 = vadd.f32 %v694, %v1205
        %v1207 = vpop.f32.mrb[0].mxu0
        %1208 = vmatprep.mubr.f32.mxu0 0.0
        %1209 = vmatmul.mubr.f32.gmra.mrb[0].mxu0 %v1001
        %v1210 = vpop.f32.mrb[0].mxu0
        %v1211 = vadd.f32 %v699, %v1210
        %v1212 = vpop.f32.mrb[0].mxu0
        %1213 = vmatprep.mubr.f32.mxu0 0.0
        %1214 = vmatmul.mubr.f32.gmra.mrb[0].mxu0 %v1003
        %v1215 = vpop.f32.mrb[0].mxu0
        %v1216 = vadd.f32 %v704, %v1215
        %v1217 = vpop.f32.mrb[0].mxu0
        %1218 = vmatprep.mubr.f32.mxu0 0.0
        %1219 = vmatmul.mubr.f32.gmra.mrb[0].mxu0 %v1005
        %v1220 = vpop.f32.mrb[0].mxu0
        %v1221 = vadd.f32 %v709, %v1220
        %v1222 = vpop.f32.mrb[0].mxu0
        %1223 = vmatprep.mubr.f32.mxu0 0.0
        %1224 = vmatmul.mubr.f32.gmra.mrb[0].mxu0 %v1007
        %v1225 = vpop.f32.mrb[0].mxu0
        %v1226 = vadd.f32 %v714, %v1225
        %v1227 = vpop.f32.mrb[0].mxu0
        %1228 = vmatprep.mubr.f32.mxu0 0.0
        %1229 = vmatmul.mubr.f32.gmra.mrb[0].mxu0 %v1009
        %v1230 = vpop.f32.mrb[0].mxu0
        %v1231 = vadd.f32 %v719, %v1230
        %v1232 = vpop.f32.mrb[0].mxu0
        %1233 = vmatprep.mubr.f32.mxu0 0.0
        %1234 = vmatmul.mubr.f32.gmra.mrb[0].mxu0 %v1011
        %v1235 = vpop.f32.mrb[0].mxu0
        %v1236 = vadd.f32 %v724, %v1235
        %v1237 = vpop.f32.mrb[0].mxu0
        %1238 = vmatprep.mubr.f32.mxu0 0.0
        %1239 = vmatmul.mubr.f32.gmra.mrb[0].mxu0 %v1013
        %v1240 = vpop.f32.mrb[0].mxu0
        %v1241 = vadd.f32 %v729, %v1240
        %v1242 = vpop.f32.mrb[0].mxu0
        %1243 = vmatprep.mubr.f32.mxu0 0.0
        %1244 = vmatmul.mubr.f32.gmra.mrb[0].mxu0 %v1015
        %v1245 = vpop.f32.mrb[0].mxu0
        %v1246 = vadd.f32 %v734, %v1245
        %v1247 = vpop.f32.mrb[0].mxu0
        %1248 = vmatprep.mubr.f32.mxu0 0.0
        %1249 = vmatmul.mubr.f32.gmra.mrb[0].mxu0 %v1017
        %v1250 = vpop.f32.mrb[0].mxu0
        %v1251 = vadd.f32 %v739, %v1250
        %v1252 = vpop.f32.mrb[0].mxu0
        %1253 = vmatprep.mubr.f32.mxu0 0.0
        %1254 = vmatmul.mubr.f32.gmra.mrb[0].mxu0 %v1019
        %v1255 = vpop.f32.mrb[0].mxu0
        %v1256 = vadd.f32 %v744, %v1255
        %v1257 = vpop.f32.mrb[0].mxu0
        %1258 = vmatprep.mubr.f32.mxu0 0.0
        %1259 = vmatmul.mubr.f32.gmra.mrb[0].mxu0 %v1021
        %v1260 = vpop.f32.mrb[0].mxu0
        %v1261 = vadd.f32 %v749, %v1260
        %v1262 = vpop.f32.mrb[0].mxu0
        %1263 = vmatprep.mubr.f32.mxu0 0.0
        %1264 = vmatmul.mubr.f32.gmra.mrb[0].mxu0 %v1023
        %v1265 = vpop.f32.mrb[0].mxu0
        %v1266 = vadd.f32 %v754, %v1265
        %v1267 = vpop.f32.mrb[0].mxu0
        %1268 = vmatprep.mubr.f32.mxu0 0.0
        %1269 = vmatmul.mubr.f32.gmra.mrb[0].mxu0 %v1025
        %v1270 = vpop.f32.mrb[0].mxu0
        %v1271 = vadd.f32 %v759, %v1270
        %v1272 = vpop.f32.mrb[0].mxu0
        %1273 = vmatprep.mubr.f32.mxu0 0.0
        %1274 = vmatmul.mubr.f32.gmra.mrb[0].mxu0 %v1027
        %v1275 = vpop.f32.mrb[0].mxu0
        %v1276 = vadd.f32 %v764, %v1275
        %v1277 = vpop.f32.mrb[0].mxu0
        %1278 = vmatprep.mubr.f32.mxu0 0.0
        %1279 = vmatmul.mubr.f32.gmra.mrb[0].mxu0 %v1029
        %v1280 = vpop.f32.mrb[0].mxu0
        %v1281 = vadd.f32 %v769, %v1280
        %v1282 = vpop.f32.mrb[0].mxu0
        %1283 = vmatprep.mubr.f32.mxu0 0.0
        %1284 = vmatmul.mubr.f32.gmra.mrb[0].mxu0 %v1031
        %v1285 = vpop.f32.mrb[0].mxu0
        %v1286 = vadd.f32 %v774, %v1285
        %v1287 = vpop.f32.mrb[0].mxu0
        %1288 = vmatprep.mubr.f32.mxu0 0.0
        %1289 = vmatmul.mubr.f32.gmra.mrb[0].mxu0 %v1033
        %v1290 = vpop.f32.mrb[0].mxu0
        %v1291 = vadd.f32 %v779, %v1290
        %v1292 = vpop.f32.mrb[0].mxu0
        %1293 = vmatprep.mubr.f32.mxu0 0.0
        %1294 = vmatmul.mubr.f32.gmra.mrb[0].mxu0 %v1035
        %v1295 = vpop.f32.mrb[0].mxu0
        %v1296 = vadd.f32 %v784, %v1295
        %v1297 = vpop.f32.mrb[0].mxu0
        %1298 = vmatprep.mubr.f32.mxu0 0.0
        %1299 = vmatmul.mubr.f32.gmra.mrb[0].mxu0 %v1037
        %v1300 = vpop.f32.mrb[0].mxu0
        %v1301 = vadd.f32 %v789, %v1300
        %v1302 = vpop.f32.mrb[0].mxu0
        %1303 = vmatprep.mubr.f32.mxu0 0.0
        %1304 = vmatmul.mubr.f32.gmra.mrb[0].mxu0 %v1039
        %v1305 = vpop.f32.mrb[0].mxu0
        %v1306 = vadd.f32 %v794, %v1305
        %v1307 = vpop.f32.mrb[0].mxu0
        %1308 = vmatprep.mubr.f32.mxu0 0.0
        %1309 = vmatmul.mubr.f32.gmra.mrb[0].mxu0 %v1041
        %v1310 = vpop.f32.mrb[0].mxu0
        %v1311 = vadd.f32 %v799, %v1310
        %v1312 = vpop.f32.mrb[0].mxu0
        %1313 = vmatprep.mubr.f32.mxu0 0.0
        %1314 = vmatmul.mubr.f32.gmra.mrb[0].mxu0 %v1043
        %v1315 = vpop.f32.mrb[0].mxu0
        %v1316 = vadd.f32 %v804, %v1315
        %v1317 = vpop.f32.mrb[0].mxu0
        %1318 = vmatprep.mubr.f32.mxu0 0.0
        %1319 = vmatmul.mubr.f32.gmra.mrb[0].mxu0 %v1045
        %v1320 = vpop.f32.mrb[0].mxu0
        %v1321 = vadd.f32 %v809, %v1320
        %v1322 = vpop.f32.mrb[0].mxu0
        %1323 = vmatprep.mubr.f32.mxu0 0.0
        %1324 = vmatmul.mubr.f32.gmra.mrb[0].mxu0 %v1047
        %v1325 = vpop.f32.mrb[0].mxu0
        %v1326 = vadd.f32 %v814, %v1325
        %v1327 = vpop.f32.mrb[0].mxu0
        %1328 = vmatprep.mubr.f32.mxu0 0.0
        %1329 = vmatmul.mubr.f32.gmra.mrb[0].mxu0 %v1049
        %v1330 = vpop.f32.mrb[0].mxu0
        %v1331 = vadd.f32 %v819, %v1330
        %v1332 = vpop.f32.mrb[0].mxu0
        %1333 = vmatprep.mubr.f32.mxu0 0.0
        %1334 = vmatmul.mubr.f32.gmra.mrb[0].mxu0 %v1051
        %v1335 = vpop.f32.mrb[0].mxu0
        %v1336 = vadd.f32 %v824, %v1335
        %v1337 = vpop.f32.mrb[0].mxu0
        %1338 = vmatprep.mubr.f32.mxu0 0.0
        %1339 = vmatmul.mubr.f32.gmra.mrb[0].mxu0 %v1053
        %v1340 = vpop.f32.mrb[0].mxu0
        %v1341 = vadd.f32 %v829, %v1340
        %v1342 = vpop.f32.mrb[0].mxu0
        %1343 = vmatprep.mubr.f32.mxu0 0.0
        %1344 = vmatmul.mubr.f32.gmra.mrb[0].mxu0 %v1055
        %v1345 = vpop.f32.mrb[0].mxu0
        %v1346 = vadd.f32 %v834, %v1345
        %v1347 = vpop.f32.mrb[0].mxu0
        %1348 = vmatprep.mubr.f32.mxu0 0.0
        %1349 = vmatmul.mubr.f32.gmra.mrb[0].mxu0 %v1057
        %v1350 = vpop.f32.mrb[0].mxu0
        %v1351 = vadd.f32 %v839, %v1350
        %v1352 = vpop.f32.mrb[0].mxu0
        %1353 = vmatprep.mubr.f32.mxu0 0.0
        %1354 = vmatmul.mubr.f32.gmra.mrb[0].mxu0 %v1059
        %v1355 = vpop.f32.mrb[0].mxu0
        %v1356 = vadd.f32 %v844, %v1355
        %v1357 = vpop.f32.mrb[0].mxu0
        %1358 = vmatprep.mubr.f32.mxu0 0.0
        %1359 = vmatmul.mubr.f32.gmra.mrb[0].mxu0 %v1061
        %v1360 = vpop.f32.mrb[0].mxu0
        %v1361 = vadd.f32 %v849, %v1360
        %v1362 = vpop.f32.mrb[0].mxu0
        %1363 = vmatprep.mubr.f32.mxu0 0.0
        %1364 = vmatmul.mubr.f32.gmra.mrb[0].mxu0 %v1063
        %v1365 = vpop.f32.mrb[0].mxu0
        %v1366 = vadd.f32 %v854, %v1365
        %v1367 = vpop.f32.mrb[0].mxu0
        %1368 = vmatprep.mubr.f32.mxu0 0.0
        %1369 = vmatmul.mubr.f32.gmra.mrb[0].mxu0 %v1065
        %v1370 = vpop.f32.mrb[0].mxu0
        %v1371 = vadd.f32 %v859, %v1370
        %v1372 = vpop.f32.mrb[0].mxu0
        %1373 = vmatprep.mubr.f32.mxu0 0.0
        %1374 = vmatmul.mubr.f32.gmra.mrb[0].mxu0 %v1067
        %v1375 = vpop.f32.mrb[0].mxu0
        %v1376 = vadd.f32 %v864, %v1375
        %v1377 = vpop.f32.mrb[0].mxu0
        %1378 = vmatprep.mubr.f32.mxu0 0.0
        %1379 = vmatmul.mubr.f32.gmra.mrb[0].mxu0 %v1069
        %v1380 = vpop.f32.mrb[0].mxu0
        %v1381 = vadd.f32 %v869, %v1380
        %v1382 = vpop.f32.mrb[0].mxu0
        %1383 = vmatprep.mubr.f32.mxu0 0.0
        %1384 = vmatmul.mubr.f32.gmra.mrb[0].mxu0 %v1071
        %v1385 = vpop.f32.mrb[0].mxu0
        %v1386 = vadd.f32 %v874, %v1385
        %v1387 = vpop.f32.mrb[0].mxu0
        %1388 = vmatprep.mubr.f32.mxu0 0.0
        %1389 = vmatmul.mubr.f32.gmra.mrb[0].mxu0 %v1073
        %v1390 = vpop.f32.mrb[0].mxu0
        %v1391 = vadd.f32 %v879, %v1390
        %v1392 = vpop.f32.mrb[0].mxu0
        %1393 = vmatprep.mubr.f32.mxu0 0.0
        %1394 = vmatmul.mubr.f32.gmra.mrb[0].mxu0 %v1075
        %v1395 = vpop.f32.mrb[0].mxu0
        %v1396 = vadd.f32 %v884, %v1395
        %v1397 = vpop.f32.mrb[0].mxu0
        %1398 = vmatprep.mubr.f32.mxu0 0.0
        %1399 = vmatmul.mubr.f32.gmra.mrb[0].mxu0 %v1077
        %v1400 = vpop.f32.mrb[0].mxu0
        %v1401 = vadd.f32 %v889, %v1400
        %v1402 = vpop.f32.mrb[0].mxu0
        %1403 = vmatprep.mubr.f32.mxu0 0.0
        %1404 = vmatmul.mubr.f32.gmra.mrb[0].mxu0 %v1079
        %v1405 = vpop.f32.mrb[0].mxu0
        %v1406 = vadd.f32 %v894, %v1405
        %v1407 = vpop.f32.mrb[0].mxu0
        %1408 = vmatprep.mubr.f32.mxu0 0.0
        %1409 = vmatmul.mubr.f32.gmra.mrb[0].mxu0 %v1081
        %v1410 = vpop.f32.mrb[0].mxu0
        %v1411 = vadd.f32 %v899, %v1410
        %v1412 = vpop.f32.mrb[0].mxu0
        %1413 = vmatprep.mubr.f32.mxu0 0.0
        %1414 = vmatmul.mubr.f32.gmra.mrb[0].mxu0 %v1083
        %v1415 = vpop.f32.mrb[0].mxu0
        %v1416 = vadd.f32 %v904, %v1415
        %v1417 = vpop.f32.mrb[0].mxu0
        %1418 = vmatprep.mubr.f32.mxu0 0.0
        %1419 = vmatmul.mubr.f32.gmra.mrb[0].mxu0 %v1085
        %v1420 = vpop.f32.mrb[0].mxu0
        %v1421 = vadd.f32 %v909, %v1420
        %v1422 = vpop.f32.mrb[0].mxu0
        %1423 = vmatprep.mubr.f32.mxu0 0.0
        %1424 = vmatmul.mubr.f32.gmra.mrb[0].mxu0 %v1087
        %v1425 = vpop.f32.mrb[0].mxu0
        %v1426 = vadd.f32 %v914, %v1425
        %v1427 = vpop.f32.mrb[0].mxu0
        %1428 = vmatprep.mubr.f32.mxu0 0.0
        %1429 = vmatmul.mubr.f32.gmra.mrb[0].mxu0 %v1089
        %v1430 = vpop.f32.mrb[0].mxu0
        %v1431 = vadd.f32 %v919, %v1430
        %v1432 = vpop.f32.mrb[0].mxu0
        %1433 = vmatprep.mubr.f32.mxu0 0.0
        %1434 = vmatmul.mubr.f32.gmra.mrb[0].mxu0 %v1091
        %v1435 = vpop.f32.mrb[0].mxu0
        %v1436 = vadd.f32 %v924, %v1435
        %v1437 = vpop.f32.mrb[0].mxu0
        %1438 = vmatprep.mubr.f32.mxu0 0.0
        %1439 = vmatmul.mubr.f32.gmra.mrb[0].mxu0 %v1093
        %v1440 = vpop.f32.mrb[0].mxu0
        %v1441 = vadd.f32 %v929, %v1440
        %v1442 = vpop.f32.mrb[0].mxu0
        %1443 = vmatprep.mubr.f32.mxu0 0.0
        %1444 = vmatmul.mubr.f32.gmra.mrb[0].mxu0 %v1095
        %v1445 = vpop.f32.mrb[0].mxu0
        %v1446 = vadd.f32 %v934, %v1445
        %v1447 = vpop.f32.mrb[0].mxu0
        %1448 = vmatprep.mubr.f32.mxu0 0.0
        %1449 = vmatmul.mubr.f32.gmra.mrb[0].mxu0 %v1097
        %v1450 = vpop.f32.mrb[0].mxu0
        %v1451 = vadd.f32 %v939, %v1450
        %v1452 = vpop.f32.mrb[0].mxu0
        %1453 = vmatprep.mubr.f32.mxu0 0.0
        %1454 = vmatmul.mubr.f32.gmra.mrb[0].mxu0 %v1099
        %v1455 = vpop.f32.mrb[0].mxu0
        %v1456 = vadd.f32 %v944, %v1455
        %v1457 = vpop.f32.mrb[0].mxu0
        %1458 = vmatprep.mubr.f32.mxu0 0.0
        %1459 = vmatmul.mubr.f32.gmra.mrb[0].mxu0 %v1101
        %v1460 = vpop.f32.mrb[0].mxu0
        %v1461 = vadd.f32 %v949, %v1460
        %v1462 = vpop.f32.mrb[0].mxu0
        %1463 = vmatprep.mubr.f32.mxu0 0.0
        %1464 = vmatmul.mubr.f32.gmra.mrb[0].mxu0 %v1103
        %v1465 = vpop.f32.mrb[0].mxu0
        %v1466 = vadd.f32 %v954, %v1465
        %v1467 = vpop.f32.mrb[0].mxu0
        %1468 = vmatprep.mubr.f32.mxu0 0.0
        %1469 = vmatmul.mubr.f32.gmra.mrb[0].mxu0 %v1105
        %v1470 = vpop.f32.mrb[0].mxu0
        %v1471 = vadd.f32 %v959, %v1470
        %v1472 = vpop.f32.mrb[0].mxu0
        %1473 = vmatprep.mubr.f32.mxu0 0.0
        %1474 = vmatmul.mubr.f32.gmra.mrb[0].mxu0 %v1107
        %v1475 = vpop.f32.mrb[0].mxu0
        %v1476 = vadd.f32 %v964, %v1475
        %v1477 = vpop.f32.mrb[0].mxu0
        %1478 = vmatprep.mubr.f32.mxu0 0.0
        %1479 = vmatmul.mubr.f32.gmra.mrb[0].mxu0 %v1109
        %v1480 = vpop.f32.mrb[0].mxu0
        %v1481 = vadd.f32 %v969, %v1480
        %v1482 = vpop.f32.mrb[0].mxu0
        %1483 = vmatprep.mubr.f32.mxu0 0.0
        %1484 = vmatmul.mubr.f32.gmra.mrb[0].mxu0 %v1111
        %v1485 = vpop.f32.mrb[0].mxu0
        %v1486 = vadd.f32 %v974, %v1485
        %v1487 = vpop.f32.mrb[0].mxu0
        %1488 = vmatprep.mubr.f32.mxu0 0.0
        %1489 = vmatmul.mubr.f32.gmra.mrb[0].mxu0 %v1113
        %v1490 = vpop.f32.mrb[0].mxu0
        %v1491 = vadd.f32 %v979, %v1490
        %v1492 = vpop.f32.mrb[0].mxu0
        %1493 = vmatprep.mubr.f32.mxu0 0.0
        %1494 = vmatmul.mubr.f32.gmra.mrb[0].mxu0 %v1115
        %v1495 = vpop.f32.mrb[0].mxu0
        %v1496 = vadd.f32 %v984, %v1495
        %v1497 = vpop.f32.mrb[0].mxu0
        %1498 = vmatprep.mubr.f32.mxu0 0.0
        %1499 = vmatmul.mubr.f32.gmra.mrb[0].mxu0 %v1117
        %v1500 = vpop.f32.mrb[0].mxu0
        %v1501 = vadd.f32 %v989, %v1500
        %v1502 = vpop.f32.mrb[0].mxu0
        %1503 = vdwg.mxu0
        %v1504 = vmul.f32 %v1186, 0.5
        %v1505 = vmul.f32 %v1191, 0.5
        %v1506 = vmul.f32 %v1196, 0.5
        %v1507 = vmul.f32 %v1201, 0.5
        %v1508 = vmul.f32 %v1206, 0.5
        %v1509 = vmul.f32 %v1211, 0.5
        %v1510 = vmul.f32 %v1216, 0.5
        %v1511 = vmul.f32 %v1221, 0.5
        %v1512 = vmul.f32 %v1226, 0.5
        %v1513 = vmul.f32 %v1231, 0.5
        %v1514 = vmul.f32 %v1236, 0.5
        %v1515 = vmul.f32 %v1241, 0.5
        %v1516 = vmul.f32 %v1246, 0.5
        %v1517 = vmul.f32 %v1251, 0.5
        %v1518 = vmul.f32 %v1256, 0.5
        %v1519 = vmul.f32 %v1261, 0.5
        %v1520 = vmul.f32 %v1266, 0.5
        %v1521 = vmul.f32 %v1271, 0.5
        %v1522 = vmul.f32 %v1276, 0.5
        %v1523 = vmul.f32 %v1281, 0.5
        %v1524 = vmul.f32 %v1286, 0.5
        %v1525 = vmul.f32 %v1291, 0.5
        %v1526 = vmul.f32 %v1296, 0.5
        %v1527 = vmul.f32 %v1301, 0.5
        %v1528 = vmul.f32 %v1306, 0.5
        %v1529 = vmul.f32 %v1311, 0.5
        %v1530 = vmul.f32 %v1316, 0.5
        %v1531 = vmul.f32 %v1321, 0.5
        %v1532 = vmul.f32 %v1326, 0.5
        %v1533 = vmul.f32 %v1331, 0.5
        %v1534 = vmul.f32 %v1336, 0.5
        %v1535 = vmul.f32 %v1341, 0.5
        %v1536 = vmul.f32 %v1346, 0.5
        %v1537 = vmul.f32 %v1351, 0.5
        %v1538 = vmul.f32 %v1356, 0.5
        %v1539 = vmul.f32 %v1361, 0.5
        %v1540 = vmul.f32 %v1366, 0.5
        %v1541 = vmul.f32 %v1371, 0.5
        %v1542 = vmul.f32 %v1376, 0.5
        %v1543 = vmul.f32 %v1381, 0.5
        %v1544 = vmul.f32 %v1386, 0.5
        %v1545 = vmul.f32 %v1391, 0.5
        %v1546 = vmul.f32 %v1396, 0.5
        %v1547 = vmul.f32 %v1401, 0.5
        %v1548 = vmul.f32 %v1406, 0.5
        %v1549 = vmul.f32 %v1411, 0.5
        %v1550 = vmul.f32 %v1416, 0.5
        %v1551 = vmul.f32 %v1421, 0.5
        %v1552 = vmul.f32 %v1426, 0.5
        %v1553 = vmul.f32 %v1431, 0.5
        %v1554 = vmul.f32 %v1436, 0.5
        %v1555 = vmul.f32 %v1441, 0.5
        %v1556 = vmul.f32 %v1446, 0.5
        %v1557 = vmul.f32 %v1451, 0.5
        %v1558 = vmul.f32 %v1456, 0.5
        %v1559 = vmul.f32 %v1461, 0.5
        %v1560 = vmul.f32 %v1466, 0.5
        %v1561 = vmul.f32 %v1471, 0.5
        %v1562 = vmul.f32 %v1476, 0.5
        %v1563 = vmul.f32 %v1481, 0.5
        %v1564 = vmul.f32 %v1486, 0.5
        %v1565 = vmul.f32 %v1491, 0.5
        %v1566 = vmul.f32 %v1496, 0.5
        %v1567 = vmul.f32 %v1501, 0.5
        %v1568 = vtanh.pop %v1504
        %v1569 = vtanh.pop %v1505
        %v1570 = vtanh.pop %v1506
        %v1571 = vtanh.pop %v1507
        %v1572 = vtanh.pop %v1508
        %v1573 = vtanh.pop %v1509
        %v1574 = vtanh.pop %v1510
        %v1575 = vtanh.pop %v1511
        %v1576 = vtanh.pop %v1512
        %v1577 = vtanh.pop %v1513
        %v1578 = vtanh.pop %v1514
        %v1579 = vtanh.pop %v1515
        %v1580 = vtanh.pop %v1516
        %v1581 = vtanh.pop %v1517
        %v1582 = vtanh.pop %v1518
        %v1583 = vtanh.pop %v1519
        %v1584 = vtanh.pop %v1520
        %v1585 = vtanh.pop %v1521
        %v1586 = vtanh.pop %v1522
        %v1587 = vtanh.pop %v1523
        %v1588 = vtanh.pop %v1524
        %v1589 = vtanh.pop %v1525
        %v1590 = vtanh.pop %v1526
        %v1591 = vtanh.pop %v1527
        %v1592 = vtanh.pop %v1528
        %v1593 = vtanh.pop %v1529
        %v1594 = vtanh.pop %v1530
        %v1595 = vtanh.pop %v1531
        %v1596 = vtanh.pop %v1532
        %v1597 = vtanh.pop %v1533
        %v1598 = vtanh.pop %v1534
        %v1599 = vtanh.pop %v1535
        %v1600 = vtanh.pop %v1536
        %v1601 = vtanh.pop %v1537
        %v1602 = vtanh.pop %v1538
        %v1603 = vtanh.pop %v1539
        %v1604 = vtanh.pop %v1540
        %v1605 = vtanh.pop %v1541
        %v1606 = vtanh.pop %v1542
        %v1607 = vtanh.pop %v1543
        %v1608 = vtanh.pop %v1544
        %v1609 = vtanh.pop %v1545
        %v1610 = vtanh.pop %v1546
        %v1611 = vtanh.pop %v1547
        %v1612 = vtanh.pop %v1548
        %v1613 = vtanh.pop %v1549
        %v1614 = vtanh.pop %v1550
        %v1615 = vtanh.pop %v1551
        %v1616 = vtanh.pop %v1552
        %v1617 = vtanh.pop %v1553
        %v1618 = vtanh.pop %v1554
        %v1619 = vtanh.pop %v1555
        %v1620 = vtanh.pop %v1556
        %v1621 = vtanh.pop %v1557
        %v1622 = vtanh.pop %v1558
        %v1623 = vtanh.pop %v1559
        %v1624 = vtanh.pop %v1560
        %v1625 = vtanh.pop %v1561
        %v1626 = vtanh.pop %v1562
        %v1627 = vtanh.pop %v1563
        %v1628 = vtanh.pop %v1564
        %v1629 = vtanh.pop %v1565
        %v1630 = vtanh.pop %v1566
        %v1631 = vtanh.pop %v1567
        %v1632 = vmul.f32 %v1568, 0.5
        %v1633 = vmul.f32 %v1569, 0.5
        %v1634 = vmul.f32 %v1570, 0.5
        %v1635 = vmul.f32 %v1571, 0.5
        %v1636 = vmul.f32 %v1572, 0.5
        %v1637 = vmul.f32 %v1573, 0.5
        %v1638 = vmul.f32 %v1574, 0.5
        %v1639 = vmul.f32 %v1575, 0.5
        %v1640 = vmul.f32 %v1576, 0.5
        %v1641 = vmul.f32 %v1577, 0.5
        %v1642 = vmul.f32 %v1578, 0.5
        %v1643 = vmul.f32 %v1579, 0.5
        %v1644 = vmul.f32 %v1580, 0.5
        %v1645 = vmul.f32 %v1581, 0.5
        %v1646 = vmul.f32 %v1582, 0.5
        %v1647 = vmul.f32 %v1583, 0.5
        %v1648 = vmul.f32 %v1584, 0.5
        %v1649 = vmul.f32 %v1585, 0.5
        %v1650 = vmul.f32 %v1586, 0.5
        %v1651 = vmul.f32 %v1587, 0.5
        %v1652 = vmul.f32 %v1588, 0.5
        %v1653 = vmul.f32 %v1589, 0.5
        %v1654 = vmul.f32 %v1590, 0.5
        %v1655 = vmul.f32 %v1591, 0.5
        %v1656 = vmul.f32 %v1592, 0.5
        %v1657 = vmul.f32 %v1593, 0.5
        %v1658 = vmul.f32 %v1594, 0.5
        %v1659 = vmul.f32 %v1595, 0.5
        %v1660 = vmul.f32 %v1596, 0.5
        %v1661 = vmul.f32 %v1597, 0.5
        %v1662 = vmul.f32 %v1598, 0.5
        %v1663 = vmul.f32 %v1599, 0.5
        %v1664 = vmul.f32 %v1600, 0.5
        %v1665 = vmul.f32 %v1601, 0.5
        %v1666 = vmul.f32 %v1602, 0.5
        %v1667 = vmul.f32 %v1603, 0.5
        %v1668 = vmul.f32 %v1604, 0.5
        %v1669 = vmul.f32 %v1605, 0.5
        %v1670 = vmul.f32 %v1606, 0.5
        %v1671 = vmul.f32 %v1607, 0.5
        %v1672 = vmul.f32 %v1608, 0.5
        %v1673 = vmul.f32 %v1609, 0.5
        %v1674 = vmul.f32 %v1610, 0.5
        %v1675 = vmul.f32 %v1611, 0.5
        %v1676 = vmul.f32 %v1612, 0.5
        %v1677 = vmul.f32 %v1613, 0.5
        %v1678 = vmul.f32 %v1614, 0.5
        %v1679 = vmul.f32 %v1615, 0.5
        %v1680 = vmul.f32 %v1616, 0.5
        %v1681 = vmul.f32 %v1617, 0.5
        %v1682 = vmul.f32 %v1618, 0.5
        %v1683 = vmul.f32 %v1619, 0.5
        %v1684 = vmul.f32 %v1620, 0.5
        %v1685 = vmul.f32 %v1621, 0.5
        %v1686 = vmul.f32 %v1622, 0.5
        %v1687 = vmul.f32 %v1623, 0.5
        %v1688 = vmul.f32 %v1624, 0.5
        %v1689 = vmul.f32 %v1625, 0.5
        %v1690 = vmul.f32 %v1626, 0.5
        %v1691 = vmul.f32 %v1627, 0.5
        %v1692 = vmul.f32 %v1628, 0.5
        %v1693 = vmul.f32 %v1629, 0.5
        %v1694 = vmul.f32 %v1630, 0.5
        %v1695 = vmul.f32 %v1631, 0.5
        %v1696 = vadd.f32 %v1632, 0.5
        %v1697 = vadd.f32 %v1633, 0.5
        %v1698 = vadd.f32 %v1634, 0.5
        %v1699 = vadd.f32 %v1635, 0.5
        %v1700 = vadd.f32 %v1636, 0.5
        %v1701 = vadd.f32 %v1637, 0.5
        %v1702 = vadd.f32 %v1638, 0.5
        %v1703 = vadd.f32 %v1639, 0.5
        %v1704 = vadd.f32 %v1640, 0.5
        %v1705 = vadd.f32 %v1641, 0.5
        %v1706 = vadd.f32 %v1642, 0.5
        %v1707 = vadd.f32 %v1643, 0.5
        %v1708 = vadd.f32 %v1644, 0.5
        %v1709 = vadd.f32 %v1645, 0.5
        %v1710 = vadd.f32 %v1646, 0.5
        %v1711 = vadd.f32 %v1647, 0.5
        %v1712 = vadd.f32 %v1648, 0.5
        %v1713 = vadd.f32 %v1649, 0.5
        %v1714 = vadd.f32 %v1650, 0.5
        %v1715 = vadd.f32 %v1651, 0.5
        %v1716 = vadd.f32 %v1652, 0.5
        %v1717 = vadd.f32 %v1653, 0.5
        %v1718 = vadd.f32 %v1654, 0.5
        %v1719 = vadd.f32 %v1655, 0.5
        %v1720 = vadd.f32 %v1656, 0.5
        %v1721 = vadd.f32 %v1657, 0.5
        %v1722 = vadd.f32 %v1658, 0.5
        %v1723 = vadd.f32 %v1659, 0.5
        %v1724 = vadd.f32 %v1660, 0.5
        %v1725 = vadd.f32 %v1661, 0.5
        %v1726 = vadd.f32 %v1662, 0.5
        %v1727 = vadd.f32 %v1663, 0.5
        %v1728 = vadd.f32 %v1664, 0.5
        %v1729 = vadd.f32 %v1665, 0.5
        %v1730 = vadd.f32 %v1666, 0.5
        %v1731 = vadd.f32 %v1667, 0.5
        %v1732 = vadd.f32 %v1668, 0.5
        %v1733 = vadd.f32 %v1669, 0.5
        %v1734 = vadd.f32 %v1670, 0.5
        %v1735 = vadd.f32 %v1671, 0.5
        %v1736 = vadd.f32 %v1672, 0.5
        %v1737 = vadd.f32 %v1673, 0.5
        %v1738 = vadd.f32 %v1674, 0.5
        %v1739 = vadd.f32 %v1675, 0.5
        %v1740 = vadd.f32 %v1676, 0.5
        %v1741 = vadd.f32 %v1677, 0.5
        %v1742 = vadd.f32 %v1678, 0.5
        %v1743 = vadd.f32 %v1679, 0.5
        %v1744 = vadd.f32 %v1680, 0.5
        %v1745 = vadd.f32 %v1681, 0.5
        %v1746 = vadd.f32 %v1682, 0.5
        %v1747 = vadd.f32 %v1683, 0.5
        %v1748 = vadd.f32 %v1684, 0.5
        %v1749 = vadd.f32 %v1685, 0.5
        %v1750 = vadd.f32 %v1686, 0.5
        %v1751 = vadd.f32 %v1687, 0.5
        %v1752 = vadd.f32 %v1688, 0.5
        %v1753 = vadd.f32 %v1689, 0.5
        %v1754 = vadd.f32 %v1690, 0.5
        %v1755 = vadd.f32 %v1691, 0.5
        %v1756 = vadd.f32 %v1692, 0.5
        %v1757 = vadd.f32 %v1693, 0.5
        %v1758 = vadd.f32 %v1694, 0.5
        %v1759 = vadd.f32 %v1695, 0.5
        %1761 = vset.pattern.permute.xlu0 0
        %1762 = vperm.xlu0 %1761, %v339
        %v1763 = vpop.permute.xlu0 %1762
        %1766 = vset.pattern.permute.xlu0 0
        %1767 = vperm.xlu0 %1766, %v340
        %v1768 = vpop.permute.xlu0 %1767
        %1770 = vmatprep.subr.mxu0 0.0
        %1771 = vmatpush1.msra.mxu0 %v1696
        %1772 = vmatprep.subr.mxu0 0.0
        %1773 = vmatpush1.msra.mxu0 %v1697
        %1774 = vmatprep.subr.mxu0 0.0
        %1775 = vmatpush1.msra.mxu0 %v1698
        %1776 = vmatprep.subr.mxu0 0.0
        %1777 = vmatpush1.msra.mxu0 %v1699
        %1778 = vmatprep.subr.mxu0 0.0
        %1779 = vmatpush1.msra.mxu0 %v1700
        %1780 = vmatprep.subr.mxu0 0.0
        %1781 = vmatpush1.msra.mxu0 %v1701
        %1782 = vmatprep.subr.mxu0 0.0
        %1783 = vmatpush1.msra.mxu0 %v1702
        %1784 = vmatprep.subr.mxu0 0.0
        %1785 = vmatpush1.msra.mxu0 %v1703
        %1786 = vmatprep.subr.mxu0 0.0
        %1787 = vmatpush1.msra.mxu0 %v1704
        %1788 = vmatprep.subr.mxu0 0.0
        %1789 = vmatpush1.msra.mxu0 %v1705
        %1790 = vmatprep.subr.mxu0 0.0
        %1791 = vmatpush1.msra.mxu0 %v1706
        %1792 = vmatprep.subr.mxu0 0.0
        %1793 = vmatpush1.msra.mxu0 %v1707
        %1794 = vmatprep.subr.mxu0 0.0
        %1795 = vmatpush1.msra.mxu0 %v1708
        %1796 = vmatprep.subr.mxu0 0.0
        %1797 = vmatpush1.msra.mxu0 %v1709
        %1798 = vmatprep.subr.mxu0 0.0
        %1799 = vmatpush1.msra.mxu0 %v1710
        %1800 = vmatprep.subr.mxu0 0.0
        %1801 = vmatpush1.msra.mxu0 %v1711
        %1802 = vmatprep.subr.mxu0 0.0
        %1803 = vmatpush1.msra.mxu0 %v1712
        %1804 = vmatprep.subr.mxu0 0.0
        %1805 = vmatpush1.msra.mxu0 %v1713
        %1806 = vmatprep.subr.mxu0 0.0
        %1807 = vmatpush1.msra.mxu0 %v1714
        %1808 = vmatprep.subr.mxu0 0.0
        %1809 = vmatpush1.msra.mxu0 %v1715
        %1810 = vmatprep.subr.mxu0 0.0
        %1811 = vmatpush1.msra.mxu0 %v1716
        %1812 = vmatprep.subr.mxu0 0.0
        %1813 = vmatpush1.msra.mxu0 %v1717
        %1814 = vmatprep.subr.mxu0 0.0
        %1815 = vmatpush1.msra.mxu0 %v1718
        %1816 = vmatprep.subr.mxu0 0.0
        %1817 = vmatpush1.msra.mxu0 %v1719
        %1818 = vmatprep.subr.mxu0 0.0
        %1819 = vmatpush1.msra.mxu0 %v1720
        %1820 = vmatprep.subr.mxu0 0.0
        %1821 = vmatpush1.msra.mxu0 %v1721
        %1822 = vmatprep.subr.mxu0 0.0
        %1823 = vmatpush1.msra.mxu0 %v1722
        %1824 = vmatprep.subr.mxu0 0.0
        %1825 = vmatpush1.msra.mxu0 %v1723
        %1826 = vmatprep.subr.mxu0 0.0
        %1827 = vmatpush1.msra.mxu0 %v1724
        %1828 = vmatprep.subr.mxu0 0.0
        %1829 = vmatpush1.msra.mxu0 %v1725
        %1830 = vmatprep.subr.mxu0 0.0
        %1831 = vmatpush1.msra.mxu0 %v1726
        %1832 = vmatprep.subr.mxu0 0.0
        %1833 = vmatpush1.msra.mxu0 %v1727
        %1834 = vmatprep.mubr.f32.mxu0 %v332
        %1835 = vmatmul.mubr.f32.gmra.mrb[0].mxu0 %v331
        %v1836 = vpop.f32.mrb[0].mxu0
        %v1837 = vadd.f32 %v1763, %v1836
        %v1838 = vpop.f32.mrb[0].mxu0
        %1839 = vmatprep.mubr.f32.mxu0 %v336
        %1840 = vmatmul.mubr.f32.gmra.mrb[0].mxu0 %v335
        %v1841 = vpop.f32.mrb[0].mxu0
        %v1842 = vadd.f32 %v1768, %v1841
        %v1843 = vpop.f32.mrb[0].mxu0
        %1844 = vdwg.mxu0
        %1845 = vmatprep.subr.mxu0 0.0
        %1846 = vmatpush1.msra.mxu0 %v1728
        %1847 = vmatprep.subr.mxu0 0.0
        %1848 = vmatpush1.msra.mxu0 %v1729
        %1849 = vmatprep.subr.mxu0 0.0
        %1850 = vmatpush1.msra.mxu0 %v1730
        %1851 = vmatprep.subr.mxu0 0.0
        %1852 = vmatpush1.msra.mxu0 %v1731
        %1853 = vmatprep.subr.mxu0 0.0
        %1854 = vmatpush1.msra.mxu0 %v1732
        %1855 = vmatprep.subr.mxu0 0.0
        %1856 = vmatpush1.msra.mxu0 %v1733
        %1857 = vmatprep.subr.mxu0 0.0
        %1858 = vmatpush1.msra.mxu0 %v1734
        %1859 = vmatprep.subr.mxu0 0.0
        %1860 = vmatpush1.msra.mxu0 %v1735
        %1861 = vmatprep.subr.mxu0 0.0
        %1862 = vmatpush1.msra.mxu0 %v1736
        %1863 = vmatprep.subr.mxu0 0.0
        %1864 = vmatpush1.msra.mxu0 %v1737
        %1865 = vmatprep.subr.mxu0 0.0
        %1866 = vmatpush1.msra.mxu0 %v1738
        %1867 = vmatprep.subr.mxu0 0.0
        %1868 = vmatpush1.msra.mxu0 %v1739
        %1869 = vmatprep.subr.mxu0 0.0
        %1870 = vmatpush1.msra.mxu0 %v1740
        %1871 = vmatprep.subr.mxu0 0.0
        %1872 = vmatpush1.msra.mxu0 %v1741
        %1873 = vmatprep.subr.mxu0 0.0
        %1874 = vmatpush1.msra.mxu0 %v1742
        %1875 = vmatprep.subr.mxu0 0.0
        %1876 = vmatpush1.msra.mxu0 %v1743
        %1877 = vmatprep.subr.mxu0 0.0
        %1878 = vmatpush1.msra.mxu0 %v1744
        %1879 = vmatprep.subr.mxu0 0.0
        %1880 = vmatpush1.msra.mxu0 %v1745
        %1881 = vmatprep.subr.mxu0 0.0
        %1882 = vmatpush1.msra.mxu0 %v1746
        %1883 = vmatprep.subr.mxu0 0.0
        %1884 = vmatpush1.msra.mxu0 %v1747
        %1885 = vmatprep.subr.mxu0 0.0
        %1886 = vmatpush1.msra.mxu0 %v1748
        %1887 = vmatprep.subr.mxu0 0.0
        %1888 = vmatpush1.msra.mxu0 %v1749
        %1889 = vmatprep.subr.mxu0 0.0
        %1890 = vmatpush1.msra.mxu0 %v1750
        %1891 = vmatprep.subr.mxu0 0.0
        %1892 = vmatpush1.msra.mxu0 %v1751
        %1893 = vmatprep.subr.mxu0 0.0
        %1894 = vmatpush1.msra.mxu0 %v1752
        %1895 = vmatprep.subr.mxu0 0.0
        %1896 = vmatpush1.msra.mxu0 %v1753
        %1897 = vmatprep.subr.mxu0 0.0
        %1898 = vmatpush1.msra.mxu0 %v1754
        %1899 = vmatprep.subr.mxu0 0.0
        %1900 = vmatpush1.msra.mxu0 %v1755
        %1901 = vmatprep.subr.mxu0 0.0
        %1902 = vmatpush1.msra.mxu0 %v1756
        %1903 = vmatprep.subr.mxu0 0.0
        %1904 = vmatpush1.msra.mxu0 %v1757
        %1905 = vmatprep.subr.mxu0 0.0
        %1906 = vmatpush1.msra.mxu0 %v1758
        %1907 = vmatprep.subr.mxu0 0.0
        %1908 = vmatpush1.msra.mxu0 %v1759
        %1909 = vmatprep.mubr.f32.mxu0 %v334
        %1910 = vmatmul.mubr.f32.gmra.mrb[0].mxu0 %v333
        %v1911 = vpop.f32.mrb[0].mxu0
        %v1912 = vadd.f32 %v1837, %v1911
        %v1913 = vpop.f32.mrb[0].mxu0
        %1914 = vmatprep.mubr.f32.mxu0 %v338
        %1915 = vmatmul.mubr.f32.gmra.mrb[0].mxu0 %v337
        %v1916 = vpop.f32.mrb[0].mxu0
        %v1917 = vadd.f32 %v1842, %v1916
        %v1918 = vpop.f32.mrb[0].mxu0
        %1919 = vdwg.mxu0
        %v1920 = vmul.f32 %v1912, 0.5
        %v1921 = vmul.f32 %v1917, 0.5
        %v1922 = vtanh.pop %v1920
        %v1923 = vtanh.pop %v1921
        %v1924 = vmul.f32 %v1922, 0.5
        %v1925 = vmul.f32 %v1923, 0.5
        %v1926 = vadd.f32 %v1924, 0.5
        %v1927 = vadd.f32 %v1925, 0.5
        %v1928 = vmul.f32 %v1926, %v251
        %v1929 = vmul.f32 %v1927, %v252
        %v1930 = vadd.f32 %v1928, %v1929
        %v1931 = vrot.slane %v1930, 4
        %v1932 = vadd.f32 %v1930, %v1931
        %v1933 = vrot.slane %v1932, 2
        %v1934 = vadd.f32 %v1932, %v1933
        %v1935 = vrot.slane %v1934, 1
        %v1936 = vadd.f32 %v1934, %v1935
        %v1937 = vadd.f32 %v251, %v252
        %v1938 = vrot.slane %v1937, 4
        %v1939 = vadd.f32 %v1937, %v1938
        %v1940 = vrot.slane %v1939, 2
        %v1941 = vadd.f32 %v1939, %v1940
        %v1942 = vrot.slane %v1941, 1
        %v1943 = vadd.f32 %v1941, %v1942
        %v1944 = vrcp.pop %v1943
        %v1945 = vmul.f32 %v1936, %v1944
        %1946 = vst [vmem:[%s248] sm:$0x1] %v1945
        %s1947 = sand.u32 %s115, 1
        %s1948 = scalar_lea.sflag [#allocation4], %s1947
        %s1949 = sand.u32 %s115, 1
        %s1950 = scalar_lea.vmem [#allocation3], %s1949
        // Predicated region
        $region75: #{tpu_custom_call.1} parent=69 // pred_check
          %p1951 = pneg %p125
        $region76: #{tpu_custom_call.1} parent=69 // pred_check_branch
          %1953 = sbr.rel (%p1951) target = $region78
        $region77: #{tpu_custom_call.1} parent=69 // pred_region
          %s1955 = ssub.s32 16, 16
          %1956 = vsyncadd %s1948, %s1955
          %s1957 = smul.addr %s18, 16
          %s1958 = scalar_lea.hbm %s4, %s1957
          %s1960 = sshll.u32 %s1950, 4
          %s1961 = int_to_ptr.vmem [resolvable:$true] %s1960
          %1963 = dma.vmem_to_hbm [thread:$0]  %s1961, 16, %s1958, %s1948
        $region78: #{tpu_custom_call.1} parent=69 // pred_fallthru
          _
      $region70: #{tpu_custom_call.1} parent=5 // pred_fallthru
        _
      %p1964 = scmp.le.s32.totalorder 2, %s13
      // Predicated region
      $region79: #{tpu_custom_call.1} parent=5 // pred_check
        %p1965 = pneg %p1964
      $region80: #{tpu_custom_call.1} parent=5 // pred_check_branch
        %1967 = sbr.rel (%p1965) target = $region82
      $region81: #{tpu_custom_call.1} parent=5 // pred_region
        %s1968 = ssub.s32 %s13, 2
        // Predicated region
        $region83: #{tpu_custom_call.1} parent=81 // pred_check
          %p1969 = pneg %p131
        $region84: #{tpu_custom_call.1} parent=81 // pred_check_branch
          %1971 = sbr.rel (%p1969) target = $region86
        $region85: #{tpu_custom_call.1} parent=81 // pred_region
          %s1972 = sand.u32 %s116, 1
          %s1973 = scalar_lea.sflag [#allocation4], %s1972
          %s1974 = sand.u32 %s116, 1
          %s1975 = scalar_lea.vmem [#allocation3], %s1974
          %1976 = dma.done %s1973, 16
        $region86: #{tpu_custom_call.1} parent=81 // pred_fallthru
          _
      $region82: #{tpu_custom_call.1} parent=5 // pred_fallthru
        _
    $region6: #{tpu_custom_call.1} parent=1 // loop_footer
      %s17 = sadd.s32 1, %s13
    $region7: #{tpu_custom_call.1} parent=1 // loop_footer_branch
      %12 = sbr.rel target = $region3
    $region8: #{tpu_custom_call.1} parent=1 // loop_exit
      _
    %1977 = vsyncpa [#allocation4], 1
    %s1978 = scalar_lea.sflag [#allocation4], 1
    %1979 = vsyncpa %s1978, 1

</llo_original>
